<compile_context>
chip_gen: v7x
topology: tpu7x:2x2x1
jax: 0.10.0
libtpu: 0.0.40
codegen_flags: <defaults>
</compile_context>

<pallas_src>
import jax
import jax.numpy as jnp
from jax.experimental import pallas as pl
from jax.experimental.pallas import tpu as pltpu

VOCAB = 41            # len(domains.char2ix)
VOCAB_PAD = 48        # multiple of 16 (bf16 sublane pack); SEQ_LEN*VOCAB_PAD = 768 = 6*128
EMBED_DIM = 32
SEQ_LEN = 16
HIDDEN = 64           # already a clean sublane multiple -> no padding needed


def _pick_batch_tile(b: int) -> int:
    """Largest tile (<=1024, multiple of 256 when possible) that still gives grid >= 2."""
    for tile in (1024, 512, 256, 128):
        if b >= 2 * tile:
            return tile
    return 128


def _dga_kernel(tokt_ref, wft_ref, b1_ref, w2_ref, b2_ref, out_ref, onehot_ref):
    """One batch tile, transposed layout (batch on lanes).

    tokt_ref   : (SEQ_LEN, TB) int32                      tokens, transposed
    wft_ref    : (HIDDEN, SEQ_LEN*VOCAB_PAD) bfloat16     fused (embedding @ W1)^T
    b1_ref     : (HIDDEN, 1) float32                      Linear1 bias
    w2_ref     : (HIDDEN, 1) float32                      Linear2 weight column
    b2_ref     : (1,) float32 in SMEM                     Linear2 bias (scalar)
    out_ref    : (1, TB) float32                          lane-dense logits
    onehot_ref : (SEQ_LEN*VOCAB_PAD, TB) bfloat16 VMEM    transposed one-hot scratch
    """
    tb = tokt_ref.shape[1]

    # Character-id iota along sublanes, replicated along the (batch) lane axis.
    char_iota = jax.lax.broadcasted_iota(jnp.int32, (VOCAB_PAD, tb), 0)

    # Build the transposed one-hot slab-by-slab into VMEM scratch (bounds live vregs):
    # row (s*VOCAB_PAD + c), col b == 1 iff tokens[b, s] == c.
    for s in range(SEQ_LEN):                              # static, unrolled at trace time
        tok_row = tokt_ref[s:s + 1, :]                    # (1, TB) int32, sublane-broadcast
        onehot_ref[pl.ds(s * VOCAB_PAD, VOCAB_PAD), :] = (
            (char_iota == tok_row).astype(jnp.bfloat16))

    # Fused (embedding gather + Flatten + Linear1): one bf16 MXU matmul, f32 accumulation.
    h_t = jnp.dot(wft_ref[...], onehot_ref[...],
                  preferred_element_type=jnp.float32)     # (HIDDEN, TB)
    h_t = jnp.maximum(h_t + b1_ref[...], 0.0)             # bias bcast along lanes + ReLU

    # Linear2 (out_features = 1): VPU multiply + XLU sublane reduce -> lane-dense row.
    out_ref[...] = jnp.sum(h_t * w2_ref[...], axis=0, keepdims=True) + b2_ref[0]


def prepare_weights(emb, w1, b1, w2, b2):
    """Once-per-weight-set preparation (hoist out of the per-batch call path).

    emb: (VOCAB, EMBED_DIM); w1: (SEQ_LEN*EMBED_DIM, HIDDEN)  [== nn.Linear.weight.T];
    b1: (HIDDEN,) or (1, HIDDEN); w2: (HIDDEN, 1); b2: scalar / (1,) / (1,1).
    """
    # Fold the embedding into Linear1: fused[s, c, :] = emb[c] @ w1[s*E:(s+1)*E, :].
    w1r = w1.reshape(SEQ_LEN, EMBED_DIM, HIDDEN).astype(jnp.float32)
    fused = jnp.einsum("ve,seh->svh", emb.astype(jnp.float32), w1r)      # (S, V, H)
    fused = jnp.pad(fused, ((0, 0), (0, VOCAB_PAD - VOCAB), (0, 0)))     # (S, VP, H)
    wft = fused.reshape(SEQ_LEN * VOCAB_PAD, HIDDEN).T                   # (H, S*VP)
    wft = wft.astype(jnp.bfloat16)                                       # MXU-native dtype

    b1p = b1.reshape(-1).astype(jnp.float32).reshape(HIDDEN, 1)
    w2p = w2.reshape(-1).astype(jnp.float32).reshape(HIDDEN, 1)
    b2p = jnp.asarray(b2, jnp.float32).reshape(1,)                       # SMEM scalar
    return wft, b1p, w2p, b2p


def dga_detector_forward(tokens, prepared):
    """Forward pass. tokens: [B, SEQ_LEN] integer ids. Returns flattened logits [B] (f32)."""
    assert tokens.ndim == 2, "expected [BATCH_SIZE, SEQUENCE_LENGTH]"
    b, s = tokens.shape
    assert s == SEQ_LEN, f"expected sequence length {SEQ_LEN}, got {s}"
    wft, b1p, w2p, b2p = prepared

    # Pad the batch to a multiple of the tile; padded rows are sliced off at the end.
    tile = _pick_batch_tile(b)
    bp = pl.cdiv(b, tile) * tile
    tok = tokens.astype(jnp.int32)
    if bp != b:
        tok = jnp.pad(tok, ((0, bp - b), (0, 0)))
    tok_t = tok.T                                                        # (S, BP)

    grid = (bp // tile,)
    out = pl.pallas_call(
        _dga_kernel,
        out_shape=jax.ShapeDtypeStruct((1, bp), jnp.float32),            # lane-dense logits
        grid_spec=pltpu.PrefetchScalarGridSpec(
            num_scalar_prefetch=0,
            grid=grid,
            in_specs=[
                pl.BlockSpec((SEQ_LEN, tile), lambda i: (0, i)),         # token tile
                pl.BlockSpec(wft.shape, lambda i: (0, 0)),               # fused table (resident)
                pl.BlockSpec(b1p.shape, lambda i: (0, 0)),               # Linear1 bias
                pl.BlockSpec(w2p.shape, lambda i: (0, 0)),               # Linear2 weight column
                pl.BlockSpec((1,), lambda i: (0,),                       # Linear2 bias (scalar)
                             memory_space=pltpu.MemorySpace.SMEM),
            ],
            out_specs=pl.BlockSpec((1, tile), lambda i: (0, i)),
            scratch_shapes=[
                pltpu.VMEM((SEQ_LEN * VOCAB_PAD, tile), jnp.bfloat16),   # one-hot staging
            ],
        ),
        compiler_params=pltpu.CompilerParams(
            dimension_semantics=("parallel",)),                          # shards tiles on v7x's 2 TCs
    )(tok_t, wft, b1p, w2p, b2p)
    return out.reshape(-1)[:b]   # == classifier_output.flatten()


def _reference_forward(tokens, emb, w1, b1, w2, b2):
    """Pure-JAX f32 reference (embedding via take) for correctness check."""
    x = jnp.take(emb, tokens, axis=0)                    # (B, S, E)
    x = x.reshape(tokens.shape[0], -1)                   # (B, S*E)
    h = jnp.maximum(x @ w1 + b1, 0.0)
    return (h @ w2 + b2).reshape(-1)


if __name__ == "__main__":
    key = jax.random.PRNGKey(0)
    k_tok, k_emb, k_w1, k_b1, k_w2, k_b2 = jax.random.split(key, 6)

    batch = 200   # -> tile 128, grid of 2 steps (exercises batch padding + both v7x TCs)
    tokens = jax.random.randint(k_tok, (batch, SEQ_LEN), 0, VOCAB, dtype=jnp.int32)

    emb = jax.random.normal(k_emb, (VOCAB, EMBED_DIM), jnp.float32) * 0.1
    # NOTE: nn.Linear stores weight as (out, in); here w1 is the (in, out) = weight.T layout.
    w1 = jax.random.normal(k_w1, (SEQ_LEN * EMBED_DIM, HIDDEN), jnp.float32) * 0.05
    b1 = jax.random.normal(k_b1, (HIDDEN,), jnp.float32) * 0.01
    w2 = jax.random.normal(k_w2, (HIDDEN, 1), jnp.float32) * 0.05
    b2 = jax.random.normal(k_b2, (1,), jnp.float32) * 0.01

    prepared = prepare_weights(emb, w1, b1, w2, b2)      # hoisted out of the per-batch path
    out = dga_detector_forward(tokens, prepared)
    out = jax.block_until_ready(out)

    ref = _reference_forward(tokens, emb, w1, b1, w2, b2)
    assert out.shape == (batch,)
    # Fused table is bf16 (f32 accumulation), so allow a small absolute tolerance.
    max_err = float(jnp.max(jnp.abs(out - ref)))
    assert max_err < 2e-2, f"mismatch vs reference (max abs err {max_err})"

    print("KERNEL_OK")
</pallas_src>

<mosaic_0001>
module attributes {stable_mosaic.version = 11 : i64} {
  func.func @_dga_kernel(%arg0: i32, %arg1: memref<16x128xi32, #tpu.memory_space<vmem>>, %arg2: memref<64x768xbf16, #tpu.memory_space<vmem>>, %arg3: memref<64x1xf32, #tpu.memory_space<vmem>>, %arg4: memref<64x1xf32, #tpu.memory_space<vmem>>, %arg5: memref<1xf32, #tpu.memory_space<smem>>, %arg6: memref<1x128xf32, #tpu.memory_space<vmem>>, %arg7: memref<768x128xbf16, #tpu.memory_space<vmem>>) attributes {dimension_semantics = [#tpu.dimension_semantics<parallel>], iteration_bounds = array<i64: 2>, scalar_prefetch = 0 : i64, scratch_operands = 1 : i64, tpu.core_type = #tpu.core_type<tc>, window_params = [{transform_indices = @transform_0, window_bounds = array<i64: 16, 128>}, {pipeline_mode = #tpu.pipeline_mode<synchronous>, transform_indices = @transform_1, window_bounds = array<i64: 64, 768>}, {pipeline_mode = #tpu.pipeline_mode<synchronous>, transform_indices = @transform_2, window_bounds = array<i64: 64, 1>}, {pipeline_mode = #tpu.pipeline_mode<synchronous>, transform_indices = @transform_3, window_bounds = array<i64: 64, 1>}, {transform_indices = @transform_4, window_bounds = array<i64: 1>}, {transform_indices = @transform_5, window_bounds = array<i64: 1, 128>}]} {
    %0 = tpu.iota {dimensions = array<i32: 0>} : vector<48x128xi32>
    %c0 = arith.constant 0 : index
    %c0_0 = arith.constant 0 : index
    %1 = vector.load %arg1[%c0, %c0_0] : memref<16x128xi32, #tpu.memory_space<vmem>>, vector<1x128xi32>
    %2 = vector.broadcast %1 : vector<1x128xi32> to vector<48x128xi32>
    %3 = arith.cmpi eq, %0, %2 : vector<48x128xi32>
    %4 = arith.extui %3 : vector<48x128xi1> to vector<48x128xi32>
    %5 = arith.sitofp %4 : vector<48x128xi32> to vector<48x128xf32>
    %6 = arith.truncf %5 : vector<48x128xf32> to vector<48x128xbf16>
    %c0_1 = arith.constant 0 : index
    %c0_2 = arith.constant 0 : index
    %7 = vector.load %arg7[%c0_1, %c0_2] : memref<768x128xbf16, #tpu.memory_space<vmem>>, vector<48x128xbf16>
    tpu.vector_store %arg7[%c0_1, %c0_2], %6 {strides = array<i32>} : memref<768x128xbf16, #tpu.memory_space<vmem>>, vector<48x128xbf16>,
    %c1 = arith.constant 1 : index
    %c0_3 = arith.constant 0 : index
    %8 = vector.load %arg1[%c1, %c0_3] : memref<16x128xi32, #tpu.memory_space<vmem>>, vector<1x128xi32>
    %9 = vector.broadcast %8 : vector<1x128xi32> to vector<48x128xi32>
    %10 = arith.cmpi eq, %0, %9 : vector<48x128xi32>
    %11 = arith.extui %10 : vector<48x128xi1> to vector<48x128xi32>
    %12 = arith.sitofp %11 : vector<48x128xi32> to vector<48x128xf32>
    %13 = arith.truncf %12 : vector<48x128xf32> to vector<48x128xbf16>
    %c48 = arith.constant 48 : index
    %c0_4 = arith.constant 0 : index
    %14 = vector.load %arg7[%c48, %c0_4] : memref<768x128xbf16, #tpu.memory_space<vmem>>, vector<48x128xbf16>
    tpu.vector_store %arg7[%c48, %c0_4], %13 {strides = array<i32>} : memref<768x128xbf16, #tpu.memory_space<vmem>>, vector<48x128xbf16>,
    %c2 = arith.constant 2 : index
    %c0_5 = arith.constant 0 : index
    %15 = vector.load %arg1[%c2, %c0_5] : memref<16x128xi32, #tpu.memory_space<vmem>>, vector<1x128xi32>
    %16 = vector.broadcast %15 : vector<1x128xi32> to vector<48x128xi32>
    %17 = arith.cmpi eq, %0, %16 : vector<48x128xi32>
    %18 = arith.extui %17 : vector<48x128xi1> to vector<48x128xi32>
    %19 = arith.sitofp %18 : vector<48x128xi32> to vector<48x128xf32>
    %20 = arith.truncf %19 : vector<48x128xf32> to vector<48x128xbf16>
    %c96 = arith.constant 96 : index
    %c0_6 = arith.constant 0 : index
    %21 = vector.load %arg7[%c96, %c0_6] : memref<768x128xbf16, #tpu.memory_space<vmem>>, vector<48x128xbf16>
    tpu.vector_store %arg7[%c96, %c0_6], %20 {strides = array<i32>} : memref<768x128xbf16, #tpu.memory_space<vmem>>, vector<48x128xbf16>,
    %c3 = arith.constant 3 : index
    %c0_7 = arith.constant 0 : index
    %22 = vector.load %arg1[%c3, %c0_7] : memref<16x128xi32, #tpu.memory_space<vmem>>, vector<1x128xi32>
    %23 = vector.broadcast %22 : vector<1x128xi32> to vector<48x128xi32>
    %24 = arith.cmpi eq, %0, %23 : vector<48x128xi32>
    %25 = arith.extui %24 : vector<48x128xi1> to vector<48x128xi32>
    %26 = arith.sitofp %25 : vector<48x128xi32> to vector<48x128xf32>
    %27 = arith.truncf %26 : vector<48x128xf32> to vector<48x128xbf16>
    %c144 = arith.constant 144 : index
    %c0_8 = arith.constant 0 : index
    %28 = vector.load %arg7[%c144, %c0_8] : memref<768x128xbf16, #tpu.memory_space<vmem>>, vector<48x128xbf16>
    tpu.vector_store %arg7[%c144, %c0_8], %27 {strides = array<i32>} : memref<768x128xbf16, #tpu.memory_space<vmem>>, vector<48x128xbf16>,
    %c4 = arith.constant 4 : index
    %c0_9 = arith.constant 0 : index
    %29 = vector.load %arg1[%c4, %c0_9] : memref<16x128xi32, #tpu.memory_space<vmem>>, vector<1x128xi32>
    %30 = vector.broadcast %29 : vector<1x128xi32> to vector<48x128xi32>
    %31 = arith.cmpi eq, %0, %30 : vector<48x128xi32>
    %32 = arith.extui %31 : vector<48x128xi1> to vector<48x128xi32>
    %33 = arith.sitofp %32 : vector<48x128xi32> to vector<48x128xf32>
    %34 = arith.truncf %33 : vector<48x128xf32> to vector<48x128xbf16>
    %c192 = arith.constant 192 : index
    %c0_10 = arith.constant 0 : index
    %35 = vector.load %arg7[%c192, %c0_10] : memref<768x128xbf16, #tpu.memory_space<vmem>>, vector<48x128xbf16>
    tpu.vector_store %arg7[%c192, %c0_10], %34 {strides = array<i32>} : memref<768x128xbf16, #tpu.memory_space<vmem>>, vector<48x128xbf16>,
    %c5 = arith.constant 5 : index
    %c0_11 = arith.constant 0 : index
    %36 = vector.load %arg1[%c5, %c0_11] : memref<16x128xi32, #tpu.memory_space<vmem>>, vector<1x128xi32>
    %37 = vector.broadcast %36 : vector<1x128xi32> to vector<48x128xi32>
    %38 = arith.cmpi eq, %0, %37 : vector<48x128xi32>
    %39 = arith.extui %38 : vector<48x128xi1> to vector<48x128xi32>
    %40 = arith.sitofp %39 : vector<48x128xi32> to vector<48x128xf32>
    %41 = arith.truncf %40 : vector<48x128xf32> to vector<48x128xbf16>
    %c240 = arith.constant 240 : index
    %c0_12 = arith.constant 0 : index
    %42 = vector.load %arg7[%c240, %c0_12] : memref<768x128xbf16, #tpu.memory_space<vmem>>, vector<48x128xbf16>
    tpu.vector_store %arg7[%c240, %c0_12], %41 {strides = array<i32>} : memref<768x128xbf16, #tpu.memory_space<vmem>>, vector<48x128xbf16>,
    %c6 = arith.constant 6 : index
    %c0_13 = arith.constant 0 : index
    %43 = vector.load %arg1[%c6, %c0_13] : memref<16x128xi32, #tpu.memory_space<vmem>>, vector<1x128xi32>
    %44 = vector.broadcast %43 : vector<1x128xi32> to vector<48x128xi32>
    %45 = arith.cmpi eq, %0, %44 : vector<48x128xi32>
    %46 = arith.extui %45 : vector<48x128xi1> to vector<48x128xi32>
    %47 = arith.sitofp %46 : vector<48x128xi32> to vector<48x128xf32>
    %48 = arith.truncf %47 : vector<48x128xf32> to vector<48x128xbf16>
    %c288 = arith.constant 288 : index
    %c0_14 = arith.constant 0 : index
    %49 = vector.load %arg7[%c288, %c0_14] : memref<768x128xbf16, #tpu.memory_space<vmem>>, vector<48x128xbf16>
    tpu.vector_store %arg7[%c288, %c0_14], %48 {strides = array<i32>} : memref<768x128xbf16, #tpu.memory_space<vmem>>, vector<48x128xbf16>,
    %c7 = arith.constant 7 : index
    %c0_15 = arith.constant 0 : index
    %50 = vector.load %arg1[%c7, %c0_15] : memref<16x128xi32, #tpu.memory_space<vmem>>, vector<1x128xi32>
    %51 = vector.broadcast %50 : vector<1x128xi32> to vector<48x128xi32>
    %52 = arith.cmpi eq, %0, %51 : vector<48x128xi32>
    %53 = arith.extui %52 : vector<48x128xi1> to vector<48x128xi32>
    %54 = arith.sitofp %53 : vector<48x128xi32> to vector<48x128xf32>
    %55 = arith.truncf %54 : vector<48x128xf32> to vector<48x128xbf16>
    %c336 = arith.constant 336 : index
    %c0_16 = arith.constant 0 : index
    %56 = vector.load %arg7[%c336, %c0_16] : memref<768x128xbf16, #tpu.memory_space<vmem>>, vector<48x128xbf16>
    tpu.vector_store %arg7[%c336, %c0_16], %55 {strides = array<i32>} : memref<768x128xbf16, #tpu.memory_space<vmem>>, vector<48x128xbf16>,
    %c8 = arith.constant 8 : index
    %c0_17 = arith.constant 0 : index
    %57 = vector.load %arg1[%c8, %c0_17] : memref<16x128xi32, #tpu.memory_space<vmem>>, vector<1x128xi32>
    %58 = vector.broadcast %57 : vector<1x128xi32> to vector<48x128xi32>
    %59 = arith.cmpi eq, %0, %58 : vector<48x128xi32>
    %60 = arith.extui %59 : vector<48x128xi1> to vector<48x128xi32>
    %61 = arith.sitofp %60 : vector<48x128xi32> to vector<48x128xf32>
    %62 = arith.truncf %61 : vector<48x128xf32> to vector<48x128xbf16>
    %c384 = arith.constant 384 : index
    %c0_18 = arith.constant 0 : index
    %63 = vector.load %arg7[%c384, %c0_18] : memref<768x128xbf16, #tpu.memory_space<vmem>>, vector<48x128xbf16>
    tpu.vector_store %arg7[%c384, %c0_18], %62 {strides = array<i32>} : memref<768x128xbf16, #tpu.memory_space<vmem>>, vector<48x128xbf16>,
    %c9 = arith.constant 9 : index
    %c0_19 = arith.constant 0 : index
    %64 = vector.load %arg1[%c9, %c0_19] : memref<16x128xi32, #tpu.memory_space<vmem>>, vector<1x128xi32>
    %65 = vector.broadcast %64 : vector<1x128xi32> to vector<48x128xi32>
    %66 = arith.cmpi eq, %0, %65 : vector<48x128xi32>
    %67 = arith.extui %66 : vector<48x128xi1> to vector<48x128xi32>
    %68 = arith.sitofp %67 : vector<48x128xi32> to vector<48x128xf32>
    %69 = arith.truncf %68 : vector<48x128xf32> to vector<48x128xbf16>
    %c432 = arith.constant 432 : index
    %c0_20 = arith.constant 0 : index
    %70 = vector.load %arg7[%c432, %c0_20] : memref<768x128xbf16, #tpu.memory_space<vmem>>, vector<48x128xbf16>
    tpu.vector_store %arg7[%c432, %c0_20], %69 {strides = array<i32>} : memref<768x128xbf16, #tpu.memory_space<vmem>>, vector<48x128xbf16>,
    %c10 = arith.constant 10 : index
    %c0_21 = arith.constant 0 : index
    %71 = vector.load %arg1[%c10, %c0_21] : memref<16x128xi32, #tpu.memory_space<vmem>>, vector<1x128xi32>
    %72 = vector.broadcast %71 : vector<1x128xi32> to vector<48x128xi32>
    %73 = arith.cmpi eq, %0, %72 : vector<48x128xi32>
    %74 = arith.extui %73 : vector<48x128xi1> to vector<48x128xi32>
    %75 = arith.sitofp %74 : vector<48x128xi32> to vector<48x128xf32>
    %76 = arith.truncf %75 : vector<48x128xf32> to vector<48x128xbf16>
    %c480 = arith.constant 480 : index
    %c0_22 = arith.constant 0 : index
    %77 = vector.load %arg7[%c480, %c0_22] : memref<768x128xbf16, #tpu.memory_space<vmem>>, vector<48x128xbf16>
    tpu.vector_store %arg7[%c480, %c0_22], %76 {strides = array<i32>} : memref<768x128xbf16, #tpu.memory_space<vmem>>, vector<48x128xbf16>,
    %c11 = arith.constant 11 : index
    %c0_23 = arith.constant 0 : index
    %78 = vector.load %arg1[%c11, %c0_23] : memref<16x128xi32, #tpu.memory_space<vmem>>, vector<1x128xi32>
    %79 = vector.broadcast %78 : vector<1x128xi32> to vector<48x128xi32>
    %80 = arith.cmpi eq, %0, %79 : vector<48x128xi32>
    %81 = arith.extui %80 : vector<48x128xi1> to vector<48x128xi32>
    %82 = arith.sitofp %81 : vector<48x128xi32> to vector<48x128xf32>
    %83 = arith.truncf %82 : vector<48x128xf32> to vector<48x128xbf16>
    %c528 = arith.constant 528 : index
    %c0_24 = arith.constant 0 : index
    %84 = vector.load %arg7[%c528, %c0_24] : memref<768x128xbf16, #tpu.memory_space<vmem>>, vector<48x128xbf16>
    tpu.vector_store %arg7[%c528, %c0_24], %83 {strides = array<i32>} : memref<768x128xbf16, #tpu.memory_space<vmem>>, vector<48x128xbf16>,
    %c12 = arith.constant 12 : index
    %c0_25 = arith.constant 0 : index
    %85 = vector.load %arg1[%c12, %c0_25] : memref<16x128xi32, #tpu.memory_space<vmem>>, vector<1x128xi32>
    %86 = vector.broadcast %85 : vector<1x128xi32> to vector<48x128xi32>
    %87 = arith.cmpi eq, %0, %86 : vector<48x128xi32>
    %88 = arith.extui %87 : vector<48x128xi1> to vector<48x128xi32>
    %89 = arith.sitofp %88 : vector<48x128xi32> to vector<48x128xf32>
    %90 = arith.truncf %89 : vector<48x128xf32> to vector<48x128xbf16>
    %c576 = arith.constant 576 : index
    %c0_26 = arith.constant 0 : index
    %91 = vector.load %arg7[%c576, %c0_26] : memref<768x128xbf16, #tpu.memory_space<vmem>>, vector<48x128xbf16>
    tpu.vector_store %arg7[%c576, %c0_26], %90 {strides = array<i32>} : memref<768x128xbf16, #tpu.memory_space<vmem>>, vector<48x128xbf16>,
    %c13 = arith.constant 13 : index
    %c0_27 = arith.constant 0 : index
    %92 = vector.load %arg1[%c13, %c0_27] : memref<16x128xi32, #tpu.memory_space<vmem>>, vector<1x128xi32>
    %93 = vector.broadcast %92 : vector<1x128xi32> to vector<48x128xi32>
    %94 = arith.cmpi eq, %0, %93 : vector<48x128xi32>
    %95 = arith.extui %94 : vector<48x128xi1> to vector<48x128xi32>
    %96 = arith.sitofp %95 : vector<48x128xi32> to vector<48x128xf32>
    %97 = arith.truncf %96 : vector<48x128xf32> to vector<48x128xbf16>
    %c624 = arith.constant 624 : index
    %c0_28 = arith.constant 0 : index
    %98 = vector.load %arg7[%c624, %c0_28] : memref<768x128xbf16, #tpu.memory_space<vmem>>, vector<48x128xbf16>
    tpu.vector_store %arg7[%c624, %c0_28], %97 {strides = array<i32>} : memref<768x128xbf16, #tpu.memory_space<vmem>>, vector<48x128xbf16>,
    %c14 = arith.constant 14 : index
    %c0_29 = arith.constant 0 : index
    %99 = vector.load %arg1[%c14, %c0_29] : memref<16x128xi32, #tpu.memory_space<vmem>>, vector<1x128xi32>
    %100 = vector.broadcast %99 : vector<1x128xi32> to vector<48x128xi32>
    %101 = arith.cmpi eq, %0, %100 : vector<48x128xi32>
    %102 = arith.extui %101 : vector<48x128xi1> to vector<48x128xi32>
    %103 = arith.sitofp %102 : vector<48x128xi32> to vector<48x128xf32>
    %104 = arith.truncf %103 : vector<48x128xf32> to vector<48x128xbf16>
    %c672 = arith.constant 672 : index
    %c0_30 = arith.constant 0 : index
    %105 = vector.load %arg7[%c672, %c0_30] : memref<768x128xbf16, #tpu.memory_space<vmem>>, vector<48x128xbf16>
    tpu.vector_store %arg7[%c672, %c0_30], %104 {strides = array<i32>} : memref<768x128xbf16, #tpu.memory_space<vmem>>, vector<48x128xbf16>,
    %c15 = arith.constant 15 : index
    %c0_31 = arith.constant 0 : index
    %106 = vector.load %arg1[%c15, %c0_31] : memref<16x128xi32, #tpu.memory_space<vmem>>, vector<1x128xi32>
    %107 = vector.broadcast %106 : vector<1x128xi32> to vector<48x128xi32>
    %108 = arith.cmpi eq, %0, %107 : vector<48x128xi32>
    %109 = arith.extui %108 : vector<48x128xi1> to vector<48x128xi32>
    %110 = arith.sitofp %109 : vector<48x128xi32> to vector<48x128xf32>
    %111 = arith.truncf %110 : vector<48x128xf32> to vector<48x128xbf16>
    %c720 = arith.constant 720 : index
    %c0_32 = arith.constant 0 : index
    %112 = vector.load %arg7[%c720, %c0_32] : memref<768x128xbf16, #tpu.memory_space<vmem>>, vector<48x128xbf16>
    tpu.vector_store %arg7[%c720, %c0_32], %111 {strides = array<i32>} : memref<768x128xbf16, #tpu.memory_space<vmem>>, vector<48x128xbf16>,
    %c0_33 = arith.constant 0 : index
    %c0_34 = arith.constant 0 : index
    %113 = vector.load %arg2[%c0_33, %c0_34] : memref<64x768xbf16, #tpu.memory_space<vmem>>, vector<64x768xbf16>
    %c0_35 = arith.constant 0 : index
    %c0_36 = arith.constant 0 : index
    %114 = vector.load %arg7[%c0_35, %c0_36] : memref<768x128xbf16, #tpu.memory_space<vmem>>, vector<768x128xbf16>
    %cst = arith.constant dense<0.000000e+00> : vector<64x128xf32>
    %115 = tpu.matmul %113, %114, %cst {dimension_numbers = #tpu.dot_dimension_numbers<[1], [0], [0], [1], [0, 0, 1, 1], [], []>} : vector<64x768xbf16>, vector<768x128xbf16>, vector<64x128xf32> -> vector<64x128xf32>
    %c0_37 = arith.constant 0 : index
    %c0_38 = arith.constant 0 : index
    %116 = vector.load %arg3[%c0_37, %c0_38] : memref<64x1xf32, #tpu.memory_space<vmem>>, vector<64x1xf32>
    %117 = vector.broadcast %116 : vector<64x1xf32> to vector<64x128xf32>
    %118 = arith.addf %115, %117 : vector<64x128xf32>
    %cst_39 = arith.constant 0.000000e+00 : f32
    %119 = vector.broadcast %cst_39 : f32 to vector<64x128xf32>
    %120 = arith.maximumf %118, %119 : vector<64x128xf32>
    %c0_40 = arith.constant 0 : index
    %c0_41 = arith.constant 0 : index
    %121 = vector.load %arg4[%c0_40, %c0_41] : memref<64x1xf32, #tpu.memory_space<vmem>>, vector<64x1xf32>
    %122 = vector.broadcast %121 : vector<64x1xf32> to vector<64x128xf32>
    %123 = arith.mulf %120, %122 : vector<64x128xf32>
    %cst_42 = arith.constant dense<0.000000e+00> : vector<128xf32>
    %124 = vector.multi_reduction <add>, %123, %cst_42 [0] : vector<64x128xf32> to vector<128xf32>
    %125 = vector.shape_cast %124 : vector<128xf32> to vector<1x128xf32>
    %c0_43 = arith.constant 0 : index
    %126 = memref.load %arg5[%c0_43] : memref<1xf32, #tpu.memory_space<smem>>
    %127 = vector.broadcast %126 : f32 to vector<1x128xf32>
    %128 = arith.addf %125, %127 : vector<1x128xf32>
    %c0_44 = arith.constant 0 : index
    %c0_45 = arith.constant 0 : index
    %129 = vector.load %arg6[%c0_44, %c0_45] : memref<1x128xf32, #tpu.memory_space<vmem>>, vector<1x128xf32>
    tpu.vector_store %arg6[%c0_44, %c0_45], %128 {strides = array<i32>} : memref<1x128xf32, #tpu.memory_space<vmem>>, vector<1x128xf32>,
    return
  }
  func.func @transform_0(%arg0: i32) -> (i32, i32) {
    %c0_i32 = arith.constant 0 : i32
    %c0_i32_0 = arith.constant 0 : i32
    return %c0_i32, %arg0 : i32, i32
  }
  func.func @transform_1(%arg0: i32) -> (i32, i32) {
    %c0_i32 = arith.constant 0 : i32
    %c0_i32_0 = arith.constant 0 : i32
    %c0_i32_1 = arith.constant 0 : i32
    return %c0_i32, %c0_i32_0 : i32, i32
  }
  func.func @transform_2(%arg0: i32) -> (i32, i32) {
    %c0_i32 = arith.constant 0 : i32
    %c0_i32_0 = arith.constant 0 : i32
    %c0_i32_1 = arith.constant 0 : i32
    return %c0_i32, %c0_i32_0 : i32, i32
  }
  func.func @transform_3(%arg0: i32) -> (i32, i32) {
    %c0_i32 = arith.constant 0 : i32
    %c0_i32_0 = arith.constant 0 : i32
    %c0_i32_1 = arith.constant 0 : i32
    return %c0_i32, %c0_i32_0 : i32, i32
  }
  func.func @transform_4(%arg0: i32) -> i32 {
    %c0_i32 = arith.constant 0 : i32
    %c0_i32_0 = arith.constant 0 : i32
    return %c0_i32 : i32
  }
  func.func @transform_5(%arg0: i32) -> (i32, i32) {
    %c0_i32 = arith.constant 0 : i32
    %c0_i32_0 = arith.constant 0 : i32
    return %c0_i32, %arg0 : i32, i32
  }
}

</mosaic_0001>

<llo_original>
// kernel: tpu_custom_call.1
$region0: #{tpu_custom_call.1}
  #allocation0 [shape = 'u32[]', space=smem, size = 0x4, offset = 0x4, fixed_abs, tag = 'smem constant byte address 0x4 - core index']
  #allocation1 [shape = 'u32[144,128]{1,0:T(1,128)}', space=vmem, size = 0x12000, scoped, tag = 'internal scratch']
  #allocation2 [shape = 'bf16[768,128]{1,0:T(16,128)(2,1)}', space=vmem, size = 0x30000, scoped, tag = 'scratch operand']
  #allocation3 [shape = 'f32[1]{0:T(128)S(6)}', space=smem, size = 0x200, scoped, tag = 'scoped memory for tpu_custom_call.1']
  %s0 = inlined_call_operand.vmem [shape: s32[16,256], index: 0, kind: input, shape index: {}]
  %s1 = inlined_call_operand.hbm [shape: bf16[64,768], index: 1, kind: input, shape index: {}]
  %s2 = inlined_call_operand.vmem [shape: f32[64,1], index: 2, kind: input, shape index: {}]
  %s3 = inlined_call_operand.vmem [shape: f32[64,1], index: 3, kind: input, shape index: {}]
  %s4 = inlined_call_operand.<no memory space> [shape: f32[1], index: 4, kind: input, shape index: {}]
  %s5 = inlined_call_operand.hbm [shape: f32[1,256], index: 5, kind: output, shape index: {}]
  %s6 = sld [smem:[#allocation0]]
  $region95: #{tpu_custom_call.1} parent=0
    _
  %s8 = ssub.s32 1, %s6
  %s9 = scalar_select 0, %s8, %s6
  %10 = sst [smem:[#allocation3]] %s4
  $region1: #{tpu_custom_call.1} parent=0
    #allocation4 [shape = 'u8[16384]{0}', space=vmem, size = 0x4000, scoped, tag = 'input window, operand 0']
    #allocation5 [shape = 'u8[98304]{0}', space=vmem, size = 0x18000, scoped, tag = 'input window, operand 1, single buffered']
    #allocation6 [shape = 's32[2]{0}', space=sflag, size = 0x8, scoped, tag = 'scoped memory for tpu_custom_call.1']
    #allocation7 [shape = 's32[2]{0}', space=sflag, size = 0x8, scoped, tag = 'scoped memory for tpu_custom_call.1']
    #allocation8 [shape = 'u8[1024]{0}', space=vmem, size = 0x400, scoped, tag = 'output window, operand 0']
    %11 = vsyncpa [#allocation6], 0
    %12 = vsyncpa [#allocation7], 0
    %s13 = scalar_lea.sflag [#allocation7], 1
    %14 = vsyncpa %s13, 0
    loop: start=0, step=1, limit=4
    $region2: #{tpu_custom_call.1} parent=1 // loop_pre_header
      _
    $region3: #{tpu_custom_call.1} parent=1 // loop_header
      %s16 = sphi 0, %s20
      %p17 = scmp.ge.s32.totalorder %s16, 4
      %s26 = sphi 0, %s28
      %s29 = sphi 0, %s26
      %s30 = sphi 0, %s29
      %s46 = sphi 0, %s30
      %s50 = sphi 0, %s50
      %s52 = sphi 0, %s50
      %s53 = sphi 0, %s52
      %s67 = sphi 0, %s53
      %s71 = sphi 0, %s71
      %s73 = sphi 0, %s71
      %s74 = sphi 0, %s73
      %s88 = sphi 0, %s74
      %s92 = sphi 0, %s92
      %s94 = sphi 0, %s92
      %s95 = sphi 0, %s94
      %s109 = sphi 0, %s95
      %s113 = sphi 0, %s113
      %s115 = sphi 0, %s113
      %s116 = sphi 0, %s115
      %s130 = sphi 0, %s116
      %s136 = sphi 0, %s138
      %s139 = sphi 0, %s136
      %s140 = sphi 0, %s139
      %s156 = sphi 0, %s140
    $region4: #{tpu_custom_call.1} parent=1 // loop_header_branch
      %19 = sbr.rel (%p17) target = $region8
    $region5: #{tpu_custom_call.1} parent=1 // loop_body
      %s21 = ssub.s32 %s16, 1
      %s22 = ssub.s32 %s16, 2
      %s23 = sadd.s32 %s16, 1
      %s24 = ssub.s32 %s16, %s23
      %p25 = scmp.eq.s32.totalorder %s24, 0
      %s27 = sadd.s32 %s26, 1
      %s28 = scalar_select %p25, %s26, %s27
      %p31 = pneg %p25
      %p32 = scmp.eq.s32.totalorder %s16, 1
      %p33 = por %p31, %p32
      %p34 = scmp.ne.s32.totalorder %s26, %s29
      %p35 = scmp.eq.s32.totalorder %s16, 0
      %p36 = por %p34, %p35
      %p37 = scmp.ne.s32.totalorder %s26, %s29
      %p38 = scmp.eq.s32.totalorder %s21, 1
      %p39 = por %p37, %p38
      %p40 = scmp.ne.s32.totalorder %s29, %s30
      %p41 = scmp.eq.s32.totalorder %s21, 0
      %p42 = por %p40, %p41
      %p43 = scmp.ne.s32.totalorder %s29, %s30
      %p44 = scmp.eq.s32.totalorder %s22, 1
      %p45 = por %p43, %p44
      %p47 = scmp.ne.s32.totalorder %s30, %s46
      %p48 = scmp.eq.s32.totalorder %s22, 0
      %p49 = por %p47, %p48
      %s51 = sadd.s32 %s50, 1
      %p54 = scmp.eq.s32.totalorder %s16, 1
      %p55 = scmp.ne.s32.totalorder %s50, %s52
      %p56 = scmp.eq.s32.totalorder %s16, 0
      %p57 = por %p55, %p56
      %p58 = scmp.ne.s32.totalorder %s50, %s52
      %p59 = scmp.eq.s32.totalorder %s21, 1
      %p60 = por %p58, %p59
      %p61 = scmp.ne.s32.totalorder %s52, %s53
      %p62 = scmp.eq.s32.totalorder %s21, 0
      %p63 = por %p61, %p62
      %p64 = scmp.ne.s32.totalorder %s52, %s53
      %p65 = scmp.eq.s32.totalorder %s22, 1
      %p66 = por %p64, %p65
      %p68 = scmp.ne.s32.totalorder %s53, %s67
      %p69 = scmp.eq.s32.totalorder %s22, 0
      %p70 = por %p68, %p69
      %s72 = sadd.s32 %s71, 1
      %p75 = scmp.eq.s32.totalorder %s16, 1
      %p76 = scmp.ne.s32.totalorder %s71, %s73
      %p77 = scmp.eq.s32.totalorder %s16, 0
      %p78 = por %p76, %p77
      %p79 = scmp.ne.s32.totalorder %s71, %s73
      %p80 = scmp.eq.s32.totalorder %s21, 1
      %p81 = por %p79, %p80
      %p82 = scmp.ne.s32.totalorder %s73, %s74
      %p83 = scmp.eq.s32.totalorder %s21, 0
      %p84 = por %p82, %p83
      %p85 = scmp.ne.s32.totalorder %s73, %s74
      %p86 = scmp.eq.s32.totalorder %s22, 1
      %p87 = por %p85, %p86
      %p89 = scmp.ne.s32.totalorder %s74, %s88
      %p90 = scmp.eq.s32.totalorder %s22, 0
      %p91 = por %p89, %p90
      %s93 = sadd.s32 %s92, 1
      %p96 = scmp.eq.s32.totalorder %s16, 1
      %p97 = scmp.ne.s32.totalorder %s92, %s94
      %p98 = scmp.eq.s32.totalorder %s16, 0
      %p99 = por %p97, %p98
      %p100 = scmp.ne.s32.totalorder %s92, %s94
      %p101 = scmp.eq.s32.totalorder %s21, 1
      %p102 = por %p100, %p101
      %p103 = scmp.ne.s32.totalorder %s94, %s95
      %p104 = scmp.eq.s32.totalorder %s21, 0
      %p105 = por %p103, %p104
      %p106 = scmp.ne.s32.totalorder %s94, %s95
      %p107 = scmp.eq.s32.totalorder %s22, 1
      %p108 = por %p106, %p107
      %p110 = scmp.ne.s32.totalorder %s95, %s109
      %p111 = scmp.eq.s32.totalorder %s22, 0
      %p112 = por %p110, %p111
      %s114 = sadd.s32 %s113, 1
      %p117 = scmp.eq.s32.totalorder %s16, 1
      %p118 = scmp.ne.s32.totalorder %s113, %s115
      %p119 = scmp.eq.s32.totalorder %s16, 0
      %p120 = por %p118, %p119
      %p121 = scmp.ne.s32.totalorder %s113, %s115
      %p122 = scmp.eq.s32.totalorder %s21, 1
      %p123 = por %p121, %p122
      %p124 = scmp.ne.s32.totalorder %s115, %s116
      %p125 = scmp.eq.s32.totalorder %s21, 0
      %p126 = por %p124, %p125
      %p127 = scmp.ne.s32.totalorder %s115, %s116
      %p128 = scmp.eq.s32.totalorder %s22, 1
      %p129 = por %p127, %p128
      %p131 = scmp.ne.s32.totalorder %s116, %s130
      %p132 = scmp.eq.s32.totalorder %s22, 0
      %p133 = por %p131, %p132
      %s134 = ssub.s32 %s16, %s23
      %p135 = scmp.eq.s32.totalorder %s134, 0
      %s137 = sadd.s32 %s136, 1
      %s138 = scalar_select %p135, %s136, %s137
      %p141 = pneg %p135
      %p142 = scmp.eq.s32.totalorder %s16, 1
      %p143 = por %p141, %p142
      %p144 = scmp.ne.s32.totalorder %s136, %s139
      %p145 = scmp.eq.s32.totalorder %s16, 0
      %p146 = por %p144, %p145
      %p147 = scmp.ne.s32.totalorder %s136, %s139
      %p148 = scmp.eq.s32.totalorder %s21, 1
      %p149 = por %p147, %p148
      %p150 = scmp.ne.s32.totalorder %s139, %s140
      %p151 = scmp.eq.s32.totalorder %s21, 0
      %p152 = por %p150, %p151
      %p153 = scmp.ne.s32.totalorder %s139, %s140
      %p154 = scmp.eq.s32.totalorder %s22, 1
      %p155 = por %p153, %p154
      %p157 = scmp.ne.s32.totalorder %s140, %s156
      %p158 = scmp.eq.s32.totalorder %s22, 0
      %p159 = por %p157, %p158
      %p160 = scmp.le.s32.totalorder 1, %s16
      %p161 = scmp.lt.s32.totalorder %s16, 3
      %p162 = pnand %p160, %p161
      %p163 = pneg %p162
      // Predicated region
      $region9: #{tpu_custom_call.1} parent=5 // pred_check
        _
      $region10: #{tpu_custom_call.1} parent=5 // pred_check_branch
        %165 = sbr.rel (%p162) target = $region12
      $region11: #{tpu_custom_call.1} parent=5 // pred_region
        %s166 = ssub.s32 %s16, 1
        // Predicated region
        $region13: #{tpu_custom_call.1} parent=11 // pred_check
          %p167 = pneg %p63
        $region14: #{tpu_custom_call.1} parent=11 // pred_check_branch
          %169 = sbr.rel (%p167) target = $region16
        $region15: #{tpu_custom_call.1} parent=11 // pred_region
          %s171 = ssub.s32 3072, 3072
          %172 = vsyncadd [#allocation6], %s171
          %s173 = sshll.u32 [#allocation5], 4
          %s174 = int_to_ptr.vmem [resolvable:$true] %s173
          %179 = dma.hbm_to_vmem [thread:$0]  %s1, 3072, %s174, [#allocation6], 384, 384, 24
        $region16: #{tpu_custom_call.1} parent=11 // pred_fallthru
          _
        // Predicated region
        $region17: #{tpu_custom_call.1} parent=11 // pred_check
          %p180 = pneg %p84
        $region18: #{tpu_custom_call.1} parent=11 // pred_check_branch
          %182 = sbr.rel (%p180) target = $region20
        $region19: #{tpu_custom_call.1} parent=11 // pred_region
          _
        $region20: #{tpu_custom_call.1} parent=11 // pred_fallthru
          _
        // Predicated region
        $region21: #{tpu_custom_call.1} parent=11 // pred_check
          %p183 = pneg %p105
        $region22: #{tpu_custom_call.1} parent=11 // pred_check_branch
          %185 = sbr.rel (%p183) target = $region24
        $region23: #{tpu_custom_call.1} parent=11 // pred_region
          _
        $region24: #{tpu_custom_call.1} parent=11 // pred_fallthru
          _
        // Predicated region
        $region25: #{tpu_custom_call.1} parent=11 // pred_check
          %p186 = pneg %p126
        $region26: #{tpu_custom_call.1} parent=11 // pred_check_branch
          %188 = sbr.rel (%p186) target = $region28
        $region27: #{tpu_custom_call.1} parent=11 // pred_region
          _
        $region28: #{tpu_custom_call.1} parent=11 // pred_fallthru
          _
      $region12: #{tpu_custom_call.1} parent=5 // pred_fallthru
        _
      %p189 = scmp.lt.s32.totalorder %s16, 2
      // Predicated region
      $region29: #{tpu_custom_call.1} parent=5 // pred_check
        %p190 = pneg %p189
      $region30: #{tpu_custom_call.1} parent=5 // pred_check_branch
        %192 = sbr.rel (%p190) target = $region32
      $region31: #{tpu_custom_call.1} parent=5 // pred_region
        // Predicated region
        $region33: #{tpu_custom_call.1} parent=31 // pred_check
          %p193 = pneg %p36
        $region34: #{tpu_custom_call.1} parent=31 // pred_check_branch
          %195 = sbr.rel (%p193) target = $region36
        $region35: #{tpu_custom_call.1} parent=31 // pred_region
          %s196 = sand.u32 %s26, 1
          %s197 = sand.u32 %s26, 1
          %s198 = smul.addr %s197, 16
          %s199 = scalar_lea.vmem [#allocation4], %s198
          %s200 = smul.addr %s16, 8
          %s201 = scalar_lea.vmem %s0, %s200
          // Predicated region
          $region37: #{tpu_custom_call.1} parent=35 // pred_check
            _
          $region38: #{tpu_custom_call.1} parent=35 // pred_check_branch
            %203 = sbr.rel (0) target = $region40
          $region39: #{tpu_custom_call.1} parent=35 // pred_region
            // Predicated region
            $region41: #{tpu_custom_call.1} parent=39 // pred_check
              _
            $region42: #{tpu_custom_call.1} parent=39 // pred_check_branch
              %205 = sbr.rel (0) target = $region44
            $region43: #{tpu_custom_call.1} parent=39 // pred_region
              // Predicated region
              $region56: #{tpu_custom_call.1} parent=43 // pred_check
                _
              $region57: #{tpu_custom_call.1} parent=43 // pred_check_branch
                %222 = sbr.rel (0) target = $region59
              $region58: #{tpu_custom_call.1} parent=43 // pred_region
                loop: start=0, step=1, limit=1
                $region60: #{tpu_custom_call.1} parent=58 // loop_pre_header
                  _
                $region61: #{tpu_custom_call.1} parent=58 // loop_header
                  %s224 = sphi 0, %s228
                  %p225 = scmp.ge.s32.totalorder %s224, 1
                  %s229 = sphi %s201, %s201
                  %s230 = sphi %s199, %s199
                $region62: #{tpu_custom_call.1} parent=58 // loop_header_branch
                  %227 = sbr.rel (%p225) target = $region66
                $region63: #{tpu_custom_call.1} parent=58 // loop_body
                  %v231 = vld [vmem:[%s229] sm:$0xff]
                  %232 = vst [vmem:[%s230] sm:$0xff] %v231
                  %v233 = vld [vmem:[%s229 + $0x10] sm:$0xff]
                  %234 = vst [vmem:[%s230 + $0x8] sm:$0xff] %v233
                $region64: #{tpu_custom_call.1} parent=58 // loop_footer
                  %s228 = sadd.s32 1, %s224
                $region65: #{tpu_custom_call.1} parent=58 // loop_footer_branch
                  %223 = sbr.rel target = $region61
                $region66: #{tpu_custom_call.1} parent=58 // loop_exit
                  _
              $region59: #{tpu_custom_call.1} parent=43 // pred_fallthru
                _
              // Predicated region
              $region67: #{tpu_custom_call.1} parent=43 // pred_check
                _
              $region68: #{tpu_custom_call.1} parent=43 // pred_check_branch
                %236 = sbr.rel target = $region70
              $region69: #{tpu_custom_call.1} parent=43 // pred_region
                _
              $region70: #{tpu_custom_call.1} parent=43 // pred_fallthru
                _
            $region44: #{tpu_custom_call.1} parent=39 // pred_fallthru
              _
            // Predicated region
            $region45: #{tpu_custom_call.1} parent=39 // pred_check
              _
            $region46: #{tpu_custom_call.1} parent=39 // pred_check_branch
              %207 = sbr.rel target = $region48
            $region47: #{tpu_custom_call.1} parent=39 // pred_region
              loop: start=0, step=1, limit=1
              $region49: #{tpu_custom_call.1} parent=47 // loop_pre_header
                _
              $region50: #{tpu_custom_call.1} parent=47 // loop_header
                %s210 = sphi 0, %s214
                %p211 = scmp.ge.s32.totalorder %s210, 1
                %s215 = sphi %s201, %s201
                %s216 = sphi %s199, %s199
              $region51: #{tpu_custom_call.1} parent=47 // loop_header_branch
                %213 = sbr.rel (%p211) target = $region55
              $region52: #{tpu_custom_call.1} parent=47 // loop_body
                %v217 = vld [vmem:[%s215] sm:$0xff]
                %218 = vst [vmem:[%s216] sm:$0xff] %v217
                %v219 = vld [vmem:[%s215 + $0x10] sm:$0xff]
                %220 = vst [vmem:[%s216 + $0x8] sm:$0xff] %v219
              $region53: #{tpu_custom_call.1} parent=47 // loop_footer
                %s214 = sadd.s32 1, %s210
              $region54: #{tpu_custom_call.1} parent=47 // loop_footer_branch
                %209 = sbr.rel target = $region50
              $region55: #{tpu_custom_call.1} parent=47 // loop_exit
                _
            $region48: #{tpu_custom_call.1} parent=39 // pred_fallthru
              _
          $region40: #{tpu_custom_call.1} parent=35 // pred_fallthru
            _
          %237 = vnop
        $region36: #{tpu_custom_call.1} parent=31 // pred_fallthru
          _
      $region32: #{tpu_custom_call.1} parent=5 // pred_fallthru
        _
      %p238 = scmp.le.s32.totalorder 1, %s16
      %p239 = scmp.lt.s32.totalorder %s16, 3
      %p240 = pnand %p238, %p239
      %p241 = pneg %p240
      // Predicated region
      $region71: #{tpu_custom_call.1} parent=5 // pred_check
        _
      $region72: #{tpu_custom_call.1} parent=5 // pred_check_branch
        %243 = sbr.rel (%p240) target = $region74
      $region73: #{tpu_custom_call.1} parent=5 // pred_region
        %s244 = ssub.s32 %s16, 1
        %s245 = sand.u32 %s29, 1
        %s246 = sand.u32 %s29, 1
        %s247 = smul.addr %s246, 16
        %s248 = scalar_lea.vmem [#allocation4], %s247
        // Predicated region
        $region75: #{tpu_custom_call.1} parent=73 // pred_check
          %p249 = pneg %p42
        $region76: #{tpu_custom_call.1} parent=73 // pred_check_branch
          %251 = sbr.rel (%p249) target = $region78
        $region77: #{tpu_custom_call.1} parent=73 // pred_region
          _
        $region78: #{tpu_custom_call.1} parent=73 // pred_fallthru
          _
        // Predicated region
        $region79: #{tpu_custom_call.1} parent=73 // pred_check
          %p252 = pneg %p63
        $region80: #{tpu_custom_call.1} parent=73 // pred_check_branch
          %254 = sbr.rel (%p252) target = $region82
        $region81: #{tpu_custom_call.1} parent=73 // pred_region
          %255 = dma.done [#allocation6], 3072
        $region82: #{tpu_custom_call.1} parent=73 // pred_fallthru
          _
        %s256 = sand.u32 %s29, 1
        %s257 = sand.u32 %s29, 1
        %s258 = smul.addr %s257, 16
        %s259 = scalar_lea.vmem [#allocation4], %s258
        %p260 = pneg %p42
        %p261 = pneg %p39
        %p262 = pneg %p63
        %p263 = pneg %p60
        %p264 = pneg %p84
        %p265 = pneg %p81
        %p266 = pneg %p105
        %p267 = pneg %p102
        %p268 = pneg %p126
        %p269 = pneg %p123
        %p270 = pneg %p152
        %p271 = pneg %p149
        %s272 = sand.u32 %s139, 1
        %s273 = scalar_lea.sflag [#allocation7], %s272
        %s274 = sand.u32 %s139, 1
        %s275 = scalar_lea.vmem [#allocation8], %s274
        %v277 = vlaneseq
        %v278 = vshrl.u32 %v277, 7
        %v279 = vadd.s32 %v278, 8
        %v280 = vadd.s32 %v278, 16
        %v281 = vadd.s32 %v278, 24
        %v282 = vadd.s32 %v278, 32
        %v283 = vadd.s32 %v278, 40
        %v284 = vld [vmem:[%s248] sm:$0x1]
        %v285 = vlaneseq
        %v286 = vshrl.u32 %v285, 7
        %v287 = vsub.s32 0, %v286
        %v288 = vrot.slane %v284, %v287
        %vm289 = vcmp.eq.s32.totalorder %v278, %v288
        %vm290 = vcmp.eq.s32.totalorder %v279, %v288
        %vm291 = vcmp.eq.s32.totalorder %v280, %v288
        %vm292 = vcmp.eq.s32.totalorder %v281, %v288
        %vm293 = vcmp.eq.s32.totalorder %v282, %v288
        %vm294 = vcmp.eq.s32.totalorder %v283, %v288
        %v295 = vsel %vm289, 1, 0
        %v296 = vsel %vm290, 1, 0
        %v297 = vsel %vm291, 1, 0
        %v298 = vsel %vm292, 1, 0
        %v299 = vsel %vm293, 1, 0
        %v300 = vsel %vm294, 1, 0
        %v301 = vcvt.s32.f32 %v295
        %v302 = vcvt.s32.f32 %v296
        %v303 = vcvt.s32.f32 %v297
        %v304 = vcvt.s32.f32 %v298
        %v305 = vcvt.s32.f32 %v299
        %v306 = vcvt.s32.f32 %v300
        %v307 = vpack.c.bf16 %v302, %v301
        %v308 = vpack.c.bf16 %v304, %v303
        %v309 = vpack.c.bf16 %v306, %v305
        %310 = vst [vmem:[#allocation2] sm:$0xff] %v307
        %311 = vst [vmem:[#allocation2 + $0x8] sm:$0xff] %v308
        %312 = vst [vmem:[#allocation2 + $0x10] sm:$0xff] %v309
        %v313 = vld [vmem:[%s248 + $0x1] sm:$0x1]
        %v314 = vlaneseq
        %v315 = vshrl.u32 %v314, 7
        %v316 = vsub.s32 0, %v315
        %v317 = vrot.slane %v313, %v316
        %vm318 = vcmp.eq.s32.totalorder %v278, %v317
        %vm319 = vcmp.eq.s32.totalorder %v279, %v317
        %vm320 = vcmp.eq.s32.totalorder %v280, %v317
        %vm321 = vcmp.eq.s32.totalorder %v281, %v317
        %vm322 = vcmp.eq.s32.totalorder %v282, %v317
        %vm323 = vcmp.eq.s32.totalorder %v283, %v317
        %v324 = vsel %vm318, 1, 0
        %v325 = vsel %vm319, 1, 0
        %v326 = vsel %vm320, 1, 0
        %v327 = vsel %vm321, 1, 0
        %v328 = vsel %vm322, 1, 0
        %v329 = vsel %vm323, 1, 0
        %v330 = vcvt.s32.f32 %v324
        %v331 = vcvt.s32.f32 %v325
        %v332 = vcvt.s32.f32 %v326
        %v333 = vcvt.s32.f32 %v327
        %v334 = vcvt.s32.f32 %v328
        %v335 = vcvt.s32.f32 %v329
        %v336 = vpack.c.bf16 %v331, %v330
        %v337 = vpack.c.bf16 %v333, %v332
        %v338 = vpack.c.bf16 %v335, %v334
        %339 = vst [vmem:[#allocation2 + $0x18] sm:$0xff] %v336
        %340 = vst [vmem:[#allocation2 + $0x20] sm:$0xff] %v337
        %341 = vst [vmem:[#allocation2 + $0x28] sm:$0xff] %v338
        %v342 = vld [vmem:[%s248 + $0x2] sm:$0x1]
        %v343 = vlaneseq
        %v344 = vshrl.u32 %v343, 7
        %v345 = vsub.s32 0, %v344
        %v346 = vrot.slane %v342, %v345
        %vm347 = vcmp.eq.s32.totalorder %v278, %v346
        %vm348 = vcmp.eq.s32.totalorder %v279, %v346
        %vm349 = vcmp.eq.s32.totalorder %v280, %v346
        %vm350 = vcmp.eq.s32.totalorder %v281, %v346
        %vm351 = vcmp.eq.s32.totalorder %v282, %v346
        %vm352 = vcmp.eq.s32.totalorder %v283, %v346
        %v353 = vsel %vm347, 1, 0
        %v354 = vsel %vm348, 1, 0
        %v355 = vsel %vm349, 1, 0
        %v356 = vsel %vm350, 1, 0
        %v357 = vsel %vm351, 1, 0
        %v358 = vsel %vm352, 1, 0
        %v359 = vcvt.s32.f32 %v353
        %v360 = vcvt.s32.f32 %v354
        %v361 = vcvt.s32.f32 %v355
        %v362 = vcvt.s32.f32 %v356
        %v363 = vcvt.s32.f32 %v357
        %v364 = vcvt.s32.f32 %v358
        %v365 = vpack.c.bf16 %v360, %v359
        %v366 = vpack.c.bf16 %v362, %v361
        %v367 = vpack.c.bf16 %v364, %v363
        %368 = vst [vmem:[#allocation2 + $0x30] sm:$0xff] %v365
        %369 = vst [vmem:[#allocation2 + $0x38] sm:$0xff] %v366
        %370 = vst [vmem:[#allocation2 + $0x40] sm:$0xff] %v367
        %v371 = vld [vmem:[%s248 + $0x3] sm:$0x1]
        %v372 = vlaneseq
        %v373 = vshrl.u32 %v372, 7
        %v374 = vsub.s32 0, %v373
        %v375 = vrot.slane %v371, %v374
        %vm376 = vcmp.eq.s32.totalorder %v278, %v375
        %vm377 = vcmp.eq.s32.totalorder %v279, %v375
        %vm378 = vcmp.eq.s32.totalorder %v280, %v375
        %vm379 = vcmp.eq.s32.totalorder %v281, %v375
        %vm380 = vcmp.eq.s32.totalorder %v282, %v375
        %vm381 = vcmp.eq.s32.totalorder %v283, %v375
        %v382 = vsel %vm376, 1, 0
        %v383 = vsel %vm377, 1, 0
        %v384 = vsel %vm378, 1, 0
        %v385 = vsel %vm379, 1, 0
        %v386 = vsel %vm380, 1, 0
        %v387 = vsel %vm381, 1, 0
        %v388 = vcvt.s32.f32 %v382
        %v389 = vcvt.s32.f32 %v383
        %v390 = vcvt.s32.f32 %v384
        %v391 = vcvt.s32.f32 %v385
        %v392 = vcvt.s32.f32 %v386
        %v393 = vcvt.s32.f32 %v387
        %v394 = vpack.c.bf16 %v389, %v388
        %v395 = vpack.c.bf16 %v391, %v390
        %v396 = vpack.c.bf16 %v393, %v392
        %397 = vst [vmem:[#allocation2 + $0x48] sm:$0xff] %v394
        %398 = vst [vmem:[#allocation2 + $0x50] sm:$0xff] %v395
        %399 = vst [vmem:[#allocation2 + $0x58] sm:$0xff] %v396
        %v400 = vld [vmem:[%s248 + $0x4] sm:$0x1]
        %v401 = vlaneseq
        %v402 = vshrl.u32 %v401, 7
        %v403 = vsub.s32 0, %v402
        %v404 = vrot.slane %v400, %v403
        %vm405 = vcmp.eq.s32.totalorder %v278, %v404
        %vm406 = vcmp.eq.s32.totalorder %v279, %v404
        %vm407 = vcmp.eq.s32.totalorder %v280, %v404
        %vm408 = vcmp.eq.s32.totalorder %v281, %v404
        %vm409 = vcmp.eq.s32.totalorder %v282, %v404
        %vm410 = vcmp.eq.s32.totalorder %v283, %v404
        %v411 = vsel %vm405, 1, 0
        %v412 = vsel %vm406, 1, 0
        %v413 = vsel %vm407, 1, 0
        %v414 = vsel %vm408, 1, 0
        %v415 = vsel %vm409, 1, 0
        %v416 = vsel %vm410, 1, 0
        %v417 = vcvt.s32.f32 %v411
        %v418 = vcvt.s32.f32 %v412
        %v419 = vcvt.s32.f32 %v413
        %v420 = vcvt.s32.f32 %v414
        %v421 = vcvt.s32.f32 %v415
        %v422 = vcvt.s32.f32 %v416
        %v423 = vpack.c.bf16 %v418, %v417
        %v424 = vpack.c.bf16 %v420, %v419
        %v425 = vpack.c.bf16 %v422, %v421
        %426 = vst [vmem:[#allocation2 + $0x60] sm:$0xff] %v423
        %427 = vst [vmem:[#allocation2 + $0x68] sm:$0xff] %v424
        %428 = vst [vmem:[#allocation2 + $0x70] sm:$0xff] %v425
        %v429 = vld [vmem:[%s248 + $0x5] sm:$0x1]
        %v430 = vlaneseq
        %v431 = vshrl.u32 %v430, 7
        %v432 = vsub.s32 0, %v431
        %v433 = vrot.slane %v429, %v432
        %vm434 = vcmp.eq.s32.totalorder %v278, %v433
        %vm435 = vcmp.eq.s32.totalorder %v279, %v433
        %vm436 = vcmp.eq.s32.totalorder %v280, %v433
        %vm437 = vcmp.eq.s32.totalorder %v281, %v433
        %vm438 = vcmp.eq.s32.totalorder %v282, %v433
        %vm439 = vcmp.eq.s32.totalorder %v283, %v433
        %v440 = vsel %vm434, 1, 0
        %v441 = vsel %vm435, 1, 0
        %v442 = vsel %vm436, 1, 0
        %v443 = vsel %vm437, 1, 0
        %v444 = vsel %vm438, 1, 0
        %v445 = vsel %vm439, 1, 0
        %v446 = vcvt.s32.f32 %v440
        %v447 = vcvt.s32.f32 %v441
        %v448 = vcvt.s32.f32 %v442
        %v449 = vcvt.s32.f32 %v443
        %v450 = vcvt.s32.f32 %v444
        %v451 = vcvt.s32.f32 %v445
        %v452 = vpack.c.bf16 %v447, %v446
        %v453 = vpack.c.bf16 %v449, %v448
        %v454 = vpack.c.bf16 %v451, %v450
        %455 = vst [vmem:[#allocation2 + $0x78] sm:$0xff] %v452
        %456 = vst [vmem:[#allocation2 + $0x80] sm:$0xff] %v453
        %457 = vst [vmem:[#allocation2 + $0x88] sm:$0xff] %v454
        %v458 = vld [vmem:[%s248 + $0x6] sm:$0x1]
        %v459 = vlaneseq
        %v460 = vshrl.u32 %v459, 7
        %v461 = vsub.s32 0, %v460
        %v462 = vrot.slane %v458, %v461
        %vm463 = vcmp.eq.s32.totalorder %v278, %v462
        %vm464 = vcmp.eq.s32.totalorder %v279, %v462
        %vm465 = vcmp.eq.s32.totalorder %v280, %v462
        %vm466 = vcmp.eq.s32.totalorder %v281, %v462
        %vm467 = vcmp.eq.s32.totalorder %v282, %v462
        %vm468 = vcmp.eq.s32.totalorder %v283, %v462
        %v469 = vsel %vm463, 1, 0
        %v470 = vsel %vm464, 1, 0
        %v471 = vsel %vm465, 1, 0
        %v472 = vsel %vm466, 1, 0
        %v473 = vsel %vm467, 1, 0
        %v474 = vsel %vm468, 1, 0
        %v475 = vcvt.s32.f32 %v469
        %v476 = vcvt.s32.f32 %v470
        %v477 = vcvt.s32.f32 %v471
        %v478 = vcvt.s32.f32 %v472
        %v479 = vcvt.s32.f32 %v473
        %v480 = vcvt.s32.f32 %v474
        %v481 = vpack.c.bf16 %v476, %v475
        %v482 = vpack.c.bf16 %v478, %v477
        %v483 = vpack.c.bf16 %v480, %v479
        %484 = vst [vmem:[#allocation2 + $0x90] sm:$0xff] %v481
        %485 = vst [vmem:[#allocation2 + $0x98] sm:$0xff] %v482
        %486 = vst [vmem:[#allocation2 + $0xa0] sm:$0xff] %v483
        %v487 = vld [vmem:[%s248 + $0x7] sm:$0x1]
        %v488 = vlaneseq
        %v489 = vshrl.u32 %v488, 7
        %v490 = vsub.s32 0, %v489
        %v491 = vrot.slane %v487, %v490
        %vm492 = vcmp.eq.s32.totalorder %v278, %v491
        %vm493 = vcmp.eq.s32.totalorder %v279, %v491
        %vm494 = vcmp.eq.s32.totalorder %v280, %v491
        %vm495 = vcmp.eq.s32.totalorder %v281, %v491
        %vm496 = vcmp.eq.s32.totalorder %v282, %v491
        %vm497 = vcmp.eq.s32.totalorder %v283, %v491
        %v498 = vsel %vm492, 1, 0
        %v499 = vsel %vm493, 1, 0
        %v500 = vsel %vm494, 1, 0
        %v501 = vsel %vm495, 1, 0
        %v502 = vsel %vm496, 1, 0
        %v503 = vsel %vm497, 1, 0
        %v504 = vcvt.s32.f32 %v498
        %v505 = vcvt.s32.f32 %v499
        %v506 = vcvt.s32.f32 %v500
        %v507 = vcvt.s32.f32 %v501
        %v508 = vcvt.s32.f32 %v502
        %v509 = vcvt.s32.f32 %v503
        %v510 = vpack.c.bf16 %v505, %v504
        %v511 = vpack.c.bf16 %v507, %v506
        %v512 = vpack.c.bf16 %v509, %v508
        %513 = vst [vmem:[#allocation2 + $0xa8] sm:$0xff] %v510
        %514 = vst [vmem:[#allocation2 + $0xb0] sm:$0xff] %v511
        %515 = vst [vmem:[#allocation2 + $0xb8] sm:$0xff] %v512
        %v516 = vld [vmem:[%s248 + $0x8] sm:$0x1]
        %v517 = vlaneseq
        %v518 = vshrl.u32 %v517, 7
        %v519 = vsub.s32 0, %v518
        %v520 = vrot.slane %v516, %v519
        %vm521 = vcmp.eq.s32.totalorder %v278, %v520
        %vm522 = vcmp.eq.s32.totalorder %v279, %v520
        %vm523 = vcmp.eq.s32.totalorder %v280, %v520
        %vm524 = vcmp.eq.s32.totalorder %v281, %v520
        %vm525 = vcmp.eq.s32.totalorder %v282, %v520
        %vm526 = vcmp.eq.s32.totalorder %v283, %v520
        %v527 = vsel %vm521, 1, 0
        %v528 = vsel %vm522, 1, 0
        %v529 = vsel %vm523, 1, 0
        %v530 = vsel %vm524, 1, 0
        %v531 = vsel %vm525, 1, 0
        %v532 = vsel %vm526, 1, 0
        %v533 = vcvt.s32.f32 %v527
        %v534 = vcvt.s32.f32 %v528
        %v535 = vcvt.s32.f32 %v529
        %v536 = vcvt.s32.f32 %v530
        %v537 = vcvt.s32.f32 %v531
        %v538 = vcvt.s32.f32 %v532
        %v539 = vpack.c.bf16 %v534, %v533
        %v540 = vpack.c.bf16 %v536, %v535
        %v541 = vpack.c.bf16 %v538, %v537
        %542 = vst [vmem:[#allocation2 + $0xc0] sm:$0xff] %v539
        %543 = vst [vmem:[#allocation2 + $0xc8] sm:$0xff] %v540
        %544 = vst [vmem:[#allocation2 + $0xd0] sm:$0xff] %v541
        %v545 = vld [vmem:[%s248 + $0x9] sm:$0x1]
        %v546 = vlaneseq
        %v547 = vshrl.u32 %v546, 7
        %v548 = vsub.s32 0, %v547
        %v549 = vrot.slane %v545, %v548
        %vm550 = vcmp.eq.s32.totalorder %v278, %v549
        %vm551 = vcmp.eq.s32.totalorder %v279, %v549
        %vm552 = vcmp.eq.s32.totalorder %v280, %v549
        %vm553 = vcmp.eq.s32.totalorder %v281, %v549
        %vm554 = vcmp.eq.s32.totalorder %v282, %v549
        %vm555 = vcmp.eq.s32.totalorder %v283, %v549
        %v556 = vsel %vm550, 1, 0
        %v557 = vsel %vm551, 1, 0
        %v558 = vsel %vm552, 1, 0
        %v559 = vsel %vm553, 1, 0
        %v560 = vsel %vm554, 1, 0
        %v561 = vsel %vm555, 1, 0
        %v562 = vcvt.s32.f32 %v556
        %v563 = vcvt.s32.f32 %v557
        %v564 = vcvt.s32.f32 %v558
        %v565 = vcvt.s32.f32 %v559
        %v566 = vcvt.s32.f32 %v560
        %v567 = vcvt.s32.f32 %v561
        %v568 = vpack.c.bf16 %v563, %v562
        %v569 = vpack.c.bf16 %v565, %v564
        %v570 = vpack.c.bf16 %v567, %v566
        %571 = vst [vmem:[#allocation2 + $0xd8] sm:$0xff] %v568
        %572 = vst [vmem:[#allocation2 + $0xe0] sm:$0xff] %v569
        %573 = vst [vmem:[#allocation2 + $0xe8] sm:$0xff] %v570
        %v574 = vld [vmem:[%s248 + $0xa] sm:$0x1]
        %v575 = vlaneseq
        %v576 = vshrl.u32 %v575, 7
        %v577 = vsub.s32 0, %v576
        %v578 = vrot.slane %v574, %v577
        %vm579 = vcmp.eq.s32.totalorder %v278, %v578
        %vm580 = vcmp.eq.s32.totalorder %v279, %v578
        %vm581 = vcmp.eq.s32.totalorder %v280, %v578
        %vm582 = vcmp.eq.s32.totalorder %v281, %v578
        %vm583 = vcmp.eq.s32.totalorder %v282, %v578
        %vm584 = vcmp.eq.s32.totalorder %v283, %v578
        %v585 = vsel %vm579, 1, 0
        %v586 = vsel %vm580, 1, 0
        %v587 = vsel %vm581, 1, 0
        %v588 = vsel %vm582, 1, 0
        %v589 = vsel %vm583, 1, 0
        %v590 = vsel %vm584, 1, 0
        %v591 = vcvt.s32.f32 %v585
        %v592 = vcvt.s32.f32 %v586
        %v593 = vcvt.s32.f32 %v587
        %v594 = vcvt.s32.f32 %v588
        %v595 = vcvt.s32.f32 %v589
        %v596 = vcvt.s32.f32 %v590
        %v597 = vpack.c.bf16 %v592, %v591
        %v598 = vpack.c.bf16 %v594, %v593
        %v599 = vpack.c.bf16 %v596, %v595
        %600 = vst [vmem:[#allocation2 + $0xf0] sm:$0xff] %v597
        %601 = vst [vmem:[#allocation2 + $0xf8] sm:$0xff] %v598
        %602 = vst [vmem:[#allocation2 + $0x100] sm:$0xff] %v599
        %v603 = vld [vmem:[%s248 + $0xb] sm:$0x1]
        %v604 = vlaneseq
        %v605 = vshrl.u32 %v604, 7
        %v606 = vsub.s32 0, %v605
        %v607 = vrot.slane %v603, %v606
        %vm608 = vcmp.eq.s32.totalorder %v278, %v607
        %vm609 = vcmp.eq.s32.totalorder %v279, %v607
        %vm610 = vcmp.eq.s32.totalorder %v280, %v607
        %vm611 = vcmp.eq.s32.totalorder %v281, %v607
        %vm612 = vcmp.eq.s32.totalorder %v282, %v607
        %vm613 = vcmp.eq.s32.totalorder %v283, %v607
        %v614 = vsel %vm608, 1, 0
        %v615 = vsel %vm609, 1, 0
        %v616 = vsel %vm610, 1, 0
        %v617 = vsel %vm611, 1, 0
        %v618 = vsel %vm612, 1, 0
        %v619 = vsel %vm613, 1, 0
        %v620 = vcvt.s32.f32 %v614
        %v621 = vcvt.s32.f32 %v615
        %v622 = vcvt.s32.f32 %v616
        %v623 = vcvt.s32.f32 %v617
        %v624 = vcvt.s32.f32 %v618
        %v625 = vcvt.s32.f32 %v619
        %v626 = vpack.c.bf16 %v621, %v620
        %v627 = vpack.c.bf16 %v623, %v622
        %v628 = vpack.c.bf16 %v625, %v624
        %629 = vst [vmem:[#allocation2 + $0x108] sm:$0xff] %v626
        %630 = vst [vmem:[#allocation2 + $0x110] sm:$0xff] %v627
        %631 = vst [vmem:[#allocation2 + $0x118] sm:$0xff] %v628
        %v632 = vld [vmem:[%s248 + $0xc] sm:$0x1]
        %v633 = vlaneseq
        %v634 = vshrl.u32 %v633, 7
        %v635 = vsub.s32 0, %v634
        %v636 = vrot.slane %v632, %v635
        %vm637 = vcmp.eq.s32.totalorder %v278, %v636
        %vm638 = vcmp.eq.s32.totalorder %v279, %v636
        %vm639 = vcmp.eq.s32.totalorder %v280, %v636
        %vm640 = vcmp.eq.s32.totalorder %v281, %v636
        %vm641 = vcmp.eq.s32.totalorder %v282, %v636
        %vm642 = vcmp.eq.s32.totalorder %v283, %v636
        %v643 = vsel %vm637, 1, 0
        %v644 = vsel %vm638, 1, 0
        %v645 = vsel %vm639, 1, 0
        %v646 = vsel %vm640, 1, 0
        %v647 = vsel %vm641, 1, 0
        %v648 = vsel %vm642, 1, 0
        %v649 = vcvt.s32.f32 %v643
        %v650 = vcvt.s32.f32 %v644
        %v651 = vcvt.s32.f32 %v645
        %v652 = vcvt.s32.f32 %v646
        %v653 = vcvt.s32.f32 %v647
        %v654 = vcvt.s32.f32 %v648
        %v655 = vpack.c.bf16 %v650, %v649
        %v656 = vpack.c.bf16 %v652, %v651
        %v657 = vpack.c.bf16 %v654, %v653
        %658 = vst [vmem:[#allocation2 + $0x120] sm:$0xff] %v655
        %659 = vst [vmem:[#allocation2 + $0x128] sm:$0xff] %v656
        %660 = vst [vmem:[#allocation2 + $0x130] sm:$0xff] %v657
        %v661 = vld [vmem:[%s248 + $0xd] sm:$0x1]
        %v662 = vlaneseq
        %v663 = vshrl.u32 %v662, 7
        %v664 = vsub.s32 0, %v663
        %v665 = vrot.slane %v661, %v664
        %vm666 = vcmp.eq.s32.totalorder %v278, %v665
        %vm667 = vcmp.eq.s32.totalorder %v279, %v665
        %vm668 = vcmp.eq.s32.totalorder %v280, %v665
        %vm669 = vcmp.eq.s32.totalorder %v281, %v665
        %vm670 = vcmp.eq.s32.totalorder %v282, %v665
        %vm671 = vcmp.eq.s32.totalorder %v283, %v665
        %v672 = vsel %vm666, 1, 0
        %v673 = vsel %vm667, 1, 0
        %v674 = vsel %vm668, 1, 0
        %v675 = vsel %vm669, 1, 0
        %v676 = vsel %vm670, 1, 0
        %v677 = vsel %vm671, 1, 0
        %v678 = vcvt.s32.f32 %v672
        %v679 = vcvt.s32.f32 %v673
        %v680 = vcvt.s32.f32 %v674
        %v681 = vcvt.s32.f32 %v675
        %v682 = vcvt.s32.f32 %v676
        %v683 = vcvt.s32.f32 %v677
        %v684 = vpack.c.bf16 %v679, %v678
        %v685 = vpack.c.bf16 %v681, %v680
        %v686 = vpack.c.bf16 %v683, %v682
        %687 = vst [vmem:[#allocation2 + $0x138] sm:$0xff] %v684
        %688 = vst [vmem:[#allocation2 + $0x140] sm:$0xff] %v685
        %689 = vst [vmem:[#allocation2 + $0x148] sm:$0xff] %v686
        %v690 = vld [vmem:[%s248 + $0xe] sm:$0x1]
        %v691 = vlaneseq
        %v692 = vshrl.u32 %v691, 7
        %v693 = vsub.s32 0, %v692
        %v694 = vrot.slane %v690, %v693
        %vm695 = vcmp.eq.s32.totalorder %v278, %v694
        %vm696 = vcmp.eq.s32.totalorder %v279, %v694
        %vm697 = vcmp.eq.s32.totalorder %v280, %v694
        %vm698 = vcmp.eq.s32.totalorder %v281, %v694
        %vm699 = vcmp.eq.s32.totalorder %v282, %v694
        %vm700 = vcmp.eq.s32.totalorder %v283, %v694
        %v701 = vsel %vm695, 1, 0
        %v702 = vsel %vm696, 1, 0
        %v703 = vsel %vm697, 1, 0
        %v704 = vsel %vm698, 1, 0
        %v705 = vsel %vm699, 1, 0
        %v706 = vsel %vm700, 1, 0
        %v707 = vcvt.s32.f32 %v701
        %v708 = vcvt.s32.f32 %v702
        %v709 = vcvt.s32.f32 %v703
        %v710 = vcvt.s32.f32 %v704
        %v711 = vcvt.s32.f32 %v705
        %v712 = vcvt.s32.f32 %v706
        %v713 = vpack.c.bf16 %v708, %v707
        %v714 = vpack.c.bf16 %v710, %v709
        %v715 = vpack.c.bf16 %v712, %v711
        %716 = vst [vmem:[#allocation2 + $0x150] sm:$0xff] %v713
        %717 = vst [vmem:[#allocation2 + $0x158] sm:$0xff] %v714
        %718 = vst [vmem:[#allocation2 + $0x160] sm:$0xff] %v715
        %v719 = vld [vmem:[%s248 + $0xf] sm:$0x1]
        %v720 = vlaneseq
        %v721 = vshrl.u32 %v720, 7
        %v722 = vsub.s32 0, %v721
        %v723 = vrot.slane %v719, %v722
        %vm724 = vcmp.eq.s32.totalorder %v278, %v723
        %vm725 = vcmp.eq.s32.totalorder %v279, %v723
        %vm726 = vcmp.eq.s32.totalorder %v280, %v723
        %vm727 = vcmp.eq.s32.totalorder %v281, %v723
        %vm728 = vcmp.eq.s32.totalorder %v282, %v723
        %vm729 = vcmp.eq.s32.totalorder %v283, %v723
        %v730 = vsel %vm724, 1, 0
        %v731 = vsel %vm725, 1, 0
        %v732 = vsel %vm726, 1, 0
        %v733 = vsel %vm727, 1, 0
        %v734 = vsel %vm728, 1, 0
        %v735 = vsel %vm729, 1, 0
        %v736 = vcvt.s32.f32 %v730
        %v737 = vcvt.s32.f32 %v731
        %v738 = vcvt.s32.f32 %v732
        %v739 = vcvt.s32.f32 %v733
        %v740 = vcvt.s32.f32 %v734
        %v741 = vcvt.s32.f32 %v735
        %v742 = vpack.c.bf16 %v737, %v736
        %v743 = vpack.c.bf16 %v739, %v738
        %v744 = vpack.c.bf16 %v741, %v740
        %745 = vst [vmem:[#allocation2 + $0x168] sm:$0xff] %v742
        %746 = vst [vmem:[#allocation2 + $0x170] sm:$0xff] %v743
        %747 = vst [vmem:[#allocation2 + $0x178] sm:$0xff] %v744
        %v748 = vld [vmem:[#allocation5] sm:$0xff]
        %v749 = vld [vmem:[#allocation5 + $0x8] sm:$0xff]
        %v750 = vld [vmem:[#allocation5 + $0x10] sm:$0xff]
        %v751 = vld [vmem:[#allocation5 + $0x18] sm:$0xff]
        %v752 = vld [vmem:[#allocation5 + $0x20] sm:$0xff]
        %v753 = vld [vmem:[#allocation5 + $0x28] sm:$0xff]
        %v754 = vld [vmem:[#allocation5 + $0x30] sm:$0xff]
        %v755 = vld [vmem:[#allocation5 + $0x38] sm:$0xff]
        %v756 = vld [vmem:[#allocation5 + $0x40] sm:$0xff]
        %v757 = vld [vmem:[#allocation5 + $0x48] sm:$0xff]
        %v758 = vld [vmem:[#allocation5 + $0x50] sm:$0xff]
        %v759 = vld [vmem:[#allocation5 + $0x58] sm:$0xff]
        %v760 = vld [vmem:[#allocation5 + $0x60] sm:$0xff]
        %v761 = vld [vmem:[#allocation5 + $0x68] sm:$0xff]
        %v762 = vld [vmem:[#allocation5 + $0x70] sm:$0xff]
        %v763 = vld [vmem:[#allocation5 + $0x78] sm:$0xff]
        %v764 = vld [vmem:[#allocation5 + $0x80] sm:$0xff]
        %v765 = vld [vmem:[#allocation5 + $0x88] sm:$0xff]
        %v766 = vld [vmem:[#allocation5 + $0x90] sm:$0xff]
        %v767 = vld [vmem:[#allocation5 + $0x98] sm:$0xff]
        %v768 = vld [vmem:[#allocation5 + $0xa0] sm:$0xff]
        %v769 = vld [vmem:[#allocation5 + $0xa8] sm:$0xff]
        %v770 = vld [vmem:[#allocation5 + $0xb0] sm:$0xff]
        %v771 = vld [vmem:[#allocation5 + $0xb8] sm:$0xff]
        %v772 = vld [vmem:[#allocation2] sm:$0xff]
        %v773 = vld [vmem:[#allocation2 + $0x8] sm:$0xff]
        %v774 = vld [vmem:[#allocation2 + $0x10] sm:$0xff]
        %v775 = vld [vmem:[#allocation2 + $0x18] sm:$0xff]
        %v776 = vld [vmem:[#allocation2 + $0x20] sm:$0xff]
        %v777 = vld [vmem:[#allocation2 + $0x28] sm:$0xff]
        %v778 = vld [vmem:[#allocation2 + $0x30] sm:$0xff]
        %v779 = vld [vmem:[#allocation2 + $0x38] sm:$0xff]
        %v780 = vld [vmem:[#allocation2 + $0x40] sm:$0xff]
        %v781 = vld [vmem:[#allocation2 + $0x48] sm:$0xff]
        %v782 = vld [vmem:[#allocation2 + $0x50] sm:$0xff]
        %v783 = vld [vmem:[#allocation2 + $0x58] sm:$0xff]
        %v784 = vld [vmem:[#allocation2 + $0x60] sm:$0xff]
        %v785 = vld [vmem:[#allocation2 + $0x68] sm:$0xff]
        %v786 = vld [vmem:[#allocation2 + $0x70] sm:$0xff]
        %v787 = vld [vmem:[#allocation2 + $0x78] sm:$0xff]
        %v788 = vld [vmem:[#allocation2 + $0x80] sm:$0xff]
        %v789 = vld [vmem:[#allocation2 + $0x88] sm:$0xff]
        %v790 = vld [vmem:[#allocation2 + $0x90] sm:$0xff]
        %v791 = vld [vmem:[#allocation2 + $0x98] sm:$0xff]
        %v792 = vld [vmem:[#allocation2 + $0xa0] sm:$0xff]
        %v793 = vld [vmem:[#allocation2 + $0xa8] sm:$0xff]
        %v794 = vld [vmem:[#allocation2 + $0xb0] sm:$0xff]
        %v795 = vld [vmem:[#allocation2 + $0xb8] sm:$0xff]
        %v796 = vld [vmem:[#allocation2 + $0xc0] sm:$0xff]
        %v797 = vld [vmem:[#allocation2 + $0xc8] sm:$0xff]
        %v798 = vld [vmem:[#allocation2 + $0xd0] sm:$0xff]
        %v799 = vld [vmem:[#allocation2 + $0xd8] sm:$0xff]
        %v800 = vld [vmem:[#allocation2 + $0xe0] sm:$0xff]
        %v801 = vld [vmem:[#allocation2 + $0xe8] sm:$0xff]
        %v802 = vld [vmem:[#allocation2 + $0xf0] sm:$0xff]
        %v803 = vld [vmem:[#allocation2 + $0xf8] sm:$0xff]
        %v804 = vld [vmem:[#allocation2 + $0x100] sm:$0xff]
        %v805 = vld [vmem:[#allocation2 + $0x108] sm:$0xff]
        %v806 = vld [vmem:[#allocation2 + $0x110] sm:$0xff]
        %v807 = vld [vmem:[#allocation2 + $0x118] sm:$0xff]
        %v808 = vld [vmem:[#allocation2 + $0x120] sm:$0xff]
        %v809 = vld [vmem:[#allocation2 + $0x128] sm:$0xff]
        %v810 = vld [vmem:[#allocation2 + $0x130] sm:$0xff]
        %v811 = vld [vmem:[#allocation2 + $0x138] sm:$0xff]
        %v812 = vld [vmem:[#allocation2 + $0x140] sm:$0xff]
        %v813 = vld [vmem:[#allocation2 + $0x148] sm:$0xff]
        %v814 = vld [vmem:[#allocation2 + $0x150] sm:$0xff]
        %v815 = vld [vmem:[#allocation2 + $0x158] sm:$0xff]
        %v816 = vld [vmem:[#allocation2 + $0x160] sm:$0xff]
        %v817 = vld [vmem:[#allocation2 + $0x168] sm:$0xff]
        %v818 = vld [vmem:[#allocation2 + $0x170] sm:$0xff]
        %v819 = vld [vmem:[#allocation2 + $0x178] sm:$0xff]
        %v820 = vld [vmem:[%s2] sm:$0xff]
        %v821 = vld [vmem:[%s2 + $0x8] sm:$0xff]
        %v822 = vld [vmem:[%s2 + $0x10] sm:$0xff]
        %v823 = vld [vmem:[%s2 + $0x18] sm:$0xff]
        %v824 = vld [vmem:[%s2 + $0x20] sm:$0xff]
        %v825 = vld [vmem:[%s2 + $0x28] sm:$0xff]
        %v826 = vld [vmem:[%s2 + $0x30] sm:$0xff]
        %v827 = vld [vmem:[%s2 + $0x38] sm:$0xff]
        %829 = vset.pattern.permute.xlu0 0
        %830 = vperm.xlu0 %829, %v820
        %v831 = vpop.permute.xlu0 %830
        %834 = vset.pattern.permute.xlu0 0
        %835 = vperm.xlu0 %834, %v821
        %v836 = vpop.permute.xlu0 %835
        %839 = vset.pattern.permute.xlu0 0
        %840 = vperm.xlu0 %839, %v822
        %v841 = vpop.permute.xlu0 %840
        %844 = vset.pattern.permute.xlu0 0
        %845 = vperm.xlu0 %844, %v823
        %v846 = vpop.permute.xlu0 %845
        %849 = vset.pattern.permute.xlu0 0
        %850 = vperm.xlu0 %849, %v824
        %v851 = vpop.permute.xlu0 %850
        %854 = vset.pattern.permute.xlu0 0
        %855 = vperm.xlu0 %854, %v825
        %v856 = vpop.permute.xlu0 %855
        %859 = vset.pattern.permute.xlu0 0
        %860 = vperm.xlu0 %859, %v826
        %v861 = vpop.permute.xlu0 %860
        %864 = vset.pattern.permute.xlu0 0
        %865 = vperm.xlu0 %864, %v827
        %v866 = vpop.permute.xlu0 %865
        %v892 = vunpack.c.l.b16 %v748
        %v893 = vunpack.c.h.b16 %v748
        %v894 = vunpack.c.l.b16 %v749
        %v895 = vunpack.c.h.b16 %v749
        %v896 = vunpack.c.l.b16 %v750
        %v897 = vunpack.c.h.b16 %v750
        %v898 = vunpack.c.l.b16 %v751
        %v899 = vunpack.c.h.b16 %v751
        %v900 = vunpack.c.l.b16 %v752
        %v901 = vunpack.c.h.b16 %v752
        %v902 = vunpack.c.l.b16 %v753
        %v903 = vunpack.c.h.b16 %v753
        %v904 = vunpack.c.l.b16 %v754
        %v905 = vunpack.c.h.b16 %v754
        %v906 = vunpack.c.l.b16 %v755
        %v907 = vunpack.c.h.b16 %v755
        %v908 = vunpack.c.l.b16 %v756
        %v909 = vunpack.c.h.b16 %v756
        %v910 = vunpack.c.l.b16 %v757
        %v911 = vunpack.c.h.b16 %v757
        %v912 = vunpack.c.l.b16 %v758
        %v913 = vunpack.c.h.b16 %v758
        %v914 = vunpack.c.l.b16 %v759
        %v915 = vunpack.c.h.b16 %v759
        %v916 = vunpack.c.l.b16 %v760
        %v917 = vunpack.c.h.b16 %v760
        %v918 = vunpack.c.l.b16 %v761
        %v919 = vunpack.c.h.b16 %v761
        %v920 = vunpack.c.l.b16 %v762
        %v921 = vunpack.c.h.b16 %v762
        %v922 = vunpack.c.l.b16 %v763
        %v923 = vunpack.c.h.b16 %v763
        %v924 = vunpack.c.l.b16 %v764
        %v925 = vunpack.c.h.b16 %v764
        %v926 = vunpack.c.l.b16 %v765
        %v927 = vunpack.c.h.b16 %v765
        %v928 = vunpack.c.l.b16 %v766
        %v929 = vunpack.c.h.b16 %v766
        %v930 = vunpack.c.l.b16 %v767
        %v931 = vunpack.c.h.b16 %v767
        %v932 = vunpack.c.l.b16 %v768
        %v933 = vunpack.c.h.b16 %v768
        %v934 = vunpack.c.l.b16 %v769
        %v935 = vunpack.c.h.b16 %v769
        %v936 = vunpack.c.l.b16 %v770
        %v937 = vunpack.c.h.b16 %v770
        %v938 = vunpack.c.l.b16 %v771
        %v939 = vunpack.c.h.b16 %v771
        %v940 = vpack.c.b16 %v898, %v892
        %v941 = vpack.c.b16 %v899, %v893
        %v942 = vpack.c.b16 %v900, %v894
        %v943 = vpack.c.b16 %v901, %v895
        %v944 = vpack.c.b16 %v902, %v896
        %v945 = vpack.c.b16 %v903, %v897
        %v946 = vpack.c.b16 %v910, %v904
        %v947 = vpack.c.b16 %v911, %v905
        %v948 = vpack.c.b16 %v912, %v906
        %v949 = vpack.c.b16 %v913, %v907
        %v950 = vpack.c.b16 %v914, %v908
        %v951 = vpack.c.b16 %v915, %v909
        %v952 = vpack.c.b16 %v922, %v916
        %v953 = vpack.c.b16 %v923, %v917
        %v954 = vpack.c.b16 %v924, %v918
        %v955 = vpack.c.b16 %v925, %v919
        %v956 = vpack.c.b16 %v926, %v920
        %v957 = vpack.c.b16 %v927, %v921
        %v958 = vpack.c.b16 %v934, %v928
        %v959 = vpack.c.b16 %v935, %v929
        %v960 = vpack.c.b16 %v936, %v930
        %v961 = vpack.c.b16 %v937, %v931
        %v962 = vpack.c.b16 %v938, %v932
        %v963 = vpack.c.b16 %v939, %v933
        %988 = vmatprep.subr.bf16.mxu0 0
        %989 = vmatpush1.bf16.msra.mxu0 %v772
        %990 = vmatprep.subr.bf16.mxu0 0
        %991 = vmatpush1.bf16.msra.mxu0 %v773
        %992 = vmatprep.subr.bf16.mxu0 0
        %993 = vmatpush1.bf16.msra.mxu0 %v774
        %994 = vmatprep.subr.bf16.mxu0 0
        %995 = vmatpush1.bf16.msra.mxu0 %v775
        %996 = vmatprep.subr.bf16.mxu0 0
        %997 = vmatpush1.bf16.msra.mxu0 %v776
        %998 = vmatprep.subr.bf16.mxu0 0
        %999 = vmatpush1.bf16.msra.mxu0 %v777
        %1000 = vmatprep.subr.bf16.mxu0 0
        %1001 = vmatpush1.bf16.msra.mxu0 %v778
        %1002 = vmatprep.subr.bf16.mxu0 0
        %1003 = vmatpush1.bf16.msra.mxu0 %v779
        %1004 = vmatprep.subr.bf16.mxu0 0
        %1005 = vmatpush1.bf16.msra.mxu0 %v780
        %1006 = vmatprep.subr.bf16.mxu0 0
        %1007 = vmatpush1.bf16.msra.mxu0 %v781
        %1008 = vmatprep.subr.bf16.mxu0 0
        %1009 = vmatpush1.bf16.msra.mxu0 %v782
        %1010 = vmatprep.subr.bf16.mxu0 0
        %1011 = vmatpush1.bf16.msra.mxu0 %v783
        %1012 = vmatprep.subr.bf16.mxu0 0
        %1013 = vmatpush1.bf16.msra.mxu0 %v784
        %1014 = vmatprep.subr.bf16.mxu0 0
        %1015 = vmatpush1.bf16.msra.mxu0 %v785
        %1016 = vmatprep.subr.bf16.mxu0 0
        %1017 = vmatpush1.bf16.msra.mxu0 %v786
        %1018 = vmatprep.subr.bf16.mxu0 0
        %1019 = vmatpush1.bf16.msra.mxu0 %v787
        %1020 = vmatprep.mubr.bf16.mxu0 %v941
        %1021 = vmatmul.mubr.bf16.gmra.mrb[0].mxu0 %v940
        %v1022 = vpop.f32.mrb[0].mxu0
        %v1023 = vadd.f32 %v831, %v1022
        %v1024 = vpop.f32.mrb[0].mxu0
        %v1025 = vpop.f32.mrb[0].mxu0
        %v1026 = vadd.f32 %v836, %v1025
        %v1027 = vpop.f32.mrb[0].mxu0
        %1028 = vmatprep.mubr.bf16.mxu0 %v947
        %1029 = vmatmul.mubr.bf16.gmra.mrb[0].mxu0 %v946
        %v1030 = vpop.f32.mrb[0].mxu0
        %v1031 = vadd.f32 %v841, %v1030
        %v1032 = vpop.f32.mrb[0].mxu0
        %v1033 = vpop.f32.mrb[0].mxu0
        %v1034 = vadd.f32 %v846, %v1033
        %v1035 = vpop.f32.mrb[0].mxu0
        %1036 = vmatprep.mubr.bf16.mxu0 %v953
        %1037 = vmatmul.mubr.bf16.gmra.mrb[0].mxu0 %v952
        %v1038 = vpop.f32.mrb[0].mxu0
        %v1039 = vadd.f32 %v851, %v1038
        %v1040 = vpop.f32.mrb[0].mxu0
        %v1041 = vpop.f32.mrb[0].mxu0
        %v1042 = vadd.f32 %v856, %v1041
        %v1043 = vpop.f32.mrb[0].mxu0
        %1044 = vmatprep.mubr.bf16.mxu0 %v959
        %1045 = vmatmul.mubr.bf16.gmra.mrb[0].mxu0 %v958
        %v1046 = vpop.f32.mrb[0].mxu0
        %v1047 = vadd.f32 %v861, %v1046
        %v1048 = vpop.f32.mrb[0].mxu0
        %v1049 = vpop.f32.mrb[0].mxu0
        %v1050 = vadd.f32 %v866, %v1049
        %v1051 = vpop.f32.mrb[0].mxu0
        %1052 = vdwg.mxu0
        %1053 = vmatprep.subr.bf16.mxu0 0
        %1054 = vmatpush1.bf16.msra.mxu0 %v788
        %1055 = vmatprep.subr.bf16.mxu0 0
        %1056 = vmatpush1.bf16.msra.mxu0 %v789
        %1057 = vmatprep.subr.bf16.mxu0 0
        %1058 = vmatpush1.bf16.msra.mxu0 %v790
        %1059 = vmatprep.subr.bf16.mxu0 0
        %1060 = vmatpush1.bf16.msra.mxu0 %v791
        %1061 = vmatprep.subr.bf16.mxu0 0
        %1062 = vmatpush1.bf16.msra.mxu0 %v792
        %1063 = vmatprep.subr.bf16.mxu0 0
        %1064 = vmatpush1.bf16.msra.mxu0 %v793
        %1065 = vmatprep.subr.bf16.mxu0 0
        %1066 = vmatpush1.bf16.msra.mxu0 %v794
        %1067 = vmatprep.subr.bf16.mxu0 0
        %1068 = vmatpush1.bf16.msra.mxu0 %v795
        %1069 = vmatprep.subr.bf16.mxu0 0
        %1070 = vmatpush1.bf16.msra.mxu0 %v796
        %1071 = vmatprep.subr.bf16.mxu0 0
        %1072 = vmatpush1.bf16.msra.mxu0 %v797
        %1073 = vmatprep.subr.bf16.mxu0 0
        %1074 = vmatpush1.bf16.msra.mxu0 %v798
        %1075 = vmatprep.subr.bf16.mxu0 0
        %1076 = vmatpush1.bf16.msra.mxu0 %v799
        %1077 = vmatprep.subr.bf16.mxu0 0
        %1078 = vmatpush1.bf16.msra.mxu0 %v800
        %1079 = vmatprep.subr.bf16.mxu0 0
        %1080 = vmatpush1.bf16.msra.mxu0 %v801
        %1081 = vmatprep.subr.bf16.mxu0 0
        %1082 = vmatpush1.bf16.msra.mxu0 %v802
        %1083 = vmatprep.subr.bf16.mxu0 0
        %1084 = vmatpush1.bf16.msra.mxu0 %v803
        %1085 = vmatprep.mubr.bf16.mxu0 %v943
        %1086 = vmatmul.mubr.bf16.gmra.mrb[0].mxu0 %v942
        %v1087 = vpop.f32.mrb[0].mxu0
        %v1088 = vadd.f32 %v1023, %v1087
        %v1089 = vpop.f32.mrb[0].mxu0
        %v1090 = vpop.f32.mrb[0].mxu0
        %v1091 = vadd.f32 %v1026, %v1090
        %v1092 = vpop.f32.mrb[0].mxu0
        %1093 = vmatprep.mubr.bf16.mxu0 %v949
        %1094 = vmatmul.mubr.bf16.gmra.mrb[0].mxu0 %v948
        %v1095 = vpop.f32.mrb[0].mxu0
        %v1096 = vadd.f32 %v1031, %v1095
        %v1097 = vpop.f32.mrb[0].mxu0
        %v1098 = vpop.f32.mrb[0].mxu0
        %v1099 = vadd.f32 %v1034, %v1098
        %v1100 = vpop.f32.mrb[0].mxu0
        %1101 = vmatprep.mubr.bf16.mxu0 %v955
        %1102 = vmatmul.mubr.bf16.gmra.mrb[0].mxu0 %v954
        %v1103 = vpop.f32.mrb[0].mxu0
        %v1104 = vadd.f32 %v1039, %v1103
        %v1105 = vpop.f32.mrb[0].mxu0
        %v1106 = vpop.f32.mrb[0].mxu0
        %v1107 = vadd.f32 %v1042, %v1106
        %v1108 = vpop.f32.mrb[0].mxu0
        %1109 = vmatprep.mubr.bf16.mxu0 %v961
        %1110 = vmatmul.mubr.bf16.gmra.mrb[0].mxu0 %v960
        %v1111 = vpop.f32.mrb[0].mxu0
        %v1112 = vadd.f32 %v1047, %v1111
        %v1113 = vpop.f32.mrb[0].mxu0
        %v1114 = vpop.f32.mrb[0].mxu0
        %v1115 = vadd.f32 %v1050, %v1114
        %v1116 = vpop.f32.mrb[0].mxu0
        %1117 = vdwg.mxu0
        %1118 = vmatprep.subr.bf16.mxu0 0
        %1119 = vmatpush1.bf16.msra.mxu0 %v804
        %1120 = vmatprep.subr.bf16.mxu0 0
        %1121 = vmatpush1.bf16.msra.mxu0 %v805
        %1122 = vmatprep.subr.bf16.mxu0 0
        %1123 = vmatpush1.bf16.msra.mxu0 %v806
        %1124 = vmatprep.subr.bf16.mxu0 0
        %1125 = vmatpush1.bf16.msra.mxu0 %v807
        %1126 = vmatprep.subr.bf16.mxu0 0
        %1127 = vmatpush1.bf16.msra.mxu0 %v808
        %1128 = vmatprep.subr.bf16.mxu0 0
        %1129 = vmatpush1.bf16.msra.mxu0 %v809
        %1130 = vmatprep.subr.bf16.mxu0 0
        %1131 = vmatpush1.bf16.msra.mxu0 %v810
        %1132 = vmatprep.subr.bf16.mxu0 0
        %1133 = vmatpush1.bf16.msra.mxu0 %v811
        %1134 = vmatprep.subr.bf16.mxu0 0
        %1135 = vmatpush1.bf16.msra.mxu0 %v812
        %1136 = vmatprep.subr.bf16.mxu0 0
        %1137 = vmatpush1.bf16.msra.mxu0 %v813
        %1138 = vmatprep.subr.bf16.mxu0 0
        %1139 = vmatpush1.bf16.msra.mxu0 %v814
        %1140 = vmatprep.subr.bf16.mxu0 0
        %1141 = vmatpush1.bf16.msra.mxu0 %v815
        %1142 = vmatprep.subr.bf16.mxu0 0
        %1143 = vmatpush1.bf16.msra.mxu0 %v816
        %1144 = vmatprep.subr.bf16.mxu0 0
        %1145 = vmatpush1.bf16.msra.mxu0 %v817
        %1146 = vmatprep.subr.bf16.mxu0 0
        %1147 = vmatpush1.bf16.msra.mxu0 %v818
        %1148 = vmatprep.subr.bf16.mxu0 0
        %1149 = vmatpush1.bf16.msra.mxu0 %v819
        %1150 = vmatprep.mubr.bf16.mxu0 %v945
        %1151 = vmatmul.mubr.bf16.gmra.mrb[0].mxu0 %v944
        %v1152 = vpop.f32.mrb[0].mxu0
        %v1153 = vadd.f32 %v1088, %v1152
        %v1154 = vpop.f32.mrb[0].mxu0
        %v1155 = vpop.f32.mrb[0].mxu0
        %v1156 = vadd.f32 %v1091, %v1155
        %v1157 = vpop.f32.mrb[0].mxu0
        %1158 = vmatprep.mubr.bf16.mxu0 %v951
        %1159 = vmatmul.mubr.bf16.gmra.mrb[0].mxu0 %v950
        %v1160 = vpop.f32.mrb[0].mxu0
        %v1161 = vadd.f32 %v1096, %v1160
        %v1162 = vpop.f32.mrb[0].mxu0
        %v1163 = vpop.f32.mrb[0].mxu0
        %v1164 = vadd.f32 %v1099, %v1163
        %v1165 = vpop.f32.mrb[0].mxu0
        %1166 = vmatprep.mubr.bf16.mxu0 %v957
        %1167 = vmatmul.mubr.bf16.gmra.mrb[0].mxu0 %v956
        %v1168 = vpop.f32.mrb[0].mxu0
        %v1169 = vadd.f32 %v1104, %v1168
        %v1170 = vpop.f32.mrb[0].mxu0
        %v1171 = vpop.f32.mrb[0].mxu0
        %v1172 = vadd.f32 %v1107, %v1171
        %v1173 = vpop.f32.mrb[0].mxu0
        %1174 = vmatprep.mubr.bf16.mxu0 %v963
        %1175 = vmatmul.mubr.bf16.gmra.mrb[0].mxu0 %v962
        %v1176 = vpop.f32.mrb[0].mxu0
        %v1177 = vadd.f32 %v1112, %v1176
        %v1178 = vpop.f32.mrb[0].mxu0
        %v1179 = vpop.f32.mrb[0].mxu0
        %v1180 = vadd.f32 %v1115, %v1179
        %v1181 = vpop.f32.mrb[0].mxu0
        %1182 = vdwg.mxu0
        %v1183 = vmax.f32 %v1153, 0.0
        %v1184 = vmax.f32 %v1156, 0.0
        %v1185 = vmax.f32 %v1161, 0.0
        %v1186 = vmax.f32 %v1164, 0.0
        %v1187 = vmax.f32 %v1169, 0.0
        %v1188 = vmax.f32 %v1172, 0.0
        %v1189 = vmax.f32 %v1177, 0.0
        %v1190 = vmax.f32 %v1180, 0.0
        %v1191 = vld [vmem:[%s3] sm:$0xff]
        %v1192 = vld [vmem:[%s3 + $0x8] sm:$0xff]
        %v1193 = vld [vmem:[%s3 + $0x10] sm:$0xff]
        %v1194 = vld [vmem:[%s3 + $0x18] sm:$0xff]
        %v1195 = vld [vmem:[%s3 + $0x20] sm:$0xff]
        %v1196 = vld [vmem:[%s3 + $0x28] sm:$0xff]
        %v1197 = vld [vmem:[%s3 + $0x30] sm:$0xff]
        %v1198 = vld [vmem:[%s3 + $0x38] sm:$0xff]
        %1200 = vset.pattern.permute.xlu0 0
        %1201 = vperm.xlu0 %1200, %v1191
        %v1202 = vpop.permute.xlu0 %1201
        %1205 = vset.pattern.permute.xlu0 0
        %1206 = vperm.xlu0 %1205, %v1192
        %v1207 = vpop.permute.xlu0 %1206
        %1210 = vset.pattern.permute.xlu0 0
        %1211 = vperm.xlu0 %1210, %v1193
        %v1212 = vpop.permute.xlu0 %1211
        %1215 = vset.pattern.permute.xlu0 0
        %1216 = vperm.xlu0 %1215, %v1194
        %v1217 = vpop.permute.xlu0 %1216
        %1220 = vset.pattern.permute.xlu0 0
        %1221 = vperm.xlu0 %1220, %v1195
        %v1222 = vpop.permute.xlu0 %1221
        %1225 = vset.pattern.permute.xlu0 0
        %1226 = vperm.xlu0 %1225, %v1196
        %v1227 = vpop.permute.xlu0 %1226
        %1230 = vset.pattern.permute.xlu0 0
        %1231 = vperm.xlu0 %1230, %v1197
        %v1232 = vpop.permute.xlu0 %1231
        %1235 = vset.pattern.permute.xlu0 0
        %1236 = vperm.xlu0 %1235, %v1198
        %v1237 = vpop.permute.xlu0 %1236
        %v1239 = vmul.f32 %v1183, %v1202
        %v1240 = vmul.f32 %v1184, %v1207
        %v1241 = vmul.f32 %v1185, %v1212
        %v1242 = vmul.f32 %v1186, %v1217
        %v1243 = vmul.f32 %v1187, %v1222
        %v1244 = vmul.f32 %v1188, %v1227
        %v1245 = vmul.f32 %v1189, %v1232
        %v1246 = vmul.f32 %v1190, %v1237
        %v1247 = vadd.f32 %v1239, %v1240
        %v1248 = vadd.f32 %v1247, %v1241
        %v1249 = vadd.f32 %v1248, %v1242
        %v1250 = vadd.f32 %v1249, %v1243
        %v1251 = vadd.f32 %v1250, %v1244
        %v1252 = vadd.f32 %v1251, %v1245
        %v1253 = vadd.f32 %v1252, %v1246
        %v1254 = vrot.slane %v1253, 4
        %v1255 = vadd.f32 %v1253, %v1254
        %v1256 = vrot.slane %v1255, 2
        %v1257 = vadd.f32 %v1255, %v1256
        %v1258 = vrot.slane %v1257, 1
        %v1259 = vadd.f32 %v1257, %v1258
        %s1260 = sld [smem:[#allocation3]]
        %v1261 = vstv %s1260
        %v1262 = vadd.f32 %v1259, %v1261
        %1263 = vst [vmem:[%s275] sm:$0x1] %v1262
        %s1264 = sand.u32 %s139, 1
        %s1265 = scalar_lea.sflag [#allocation7], %s1264
        %s1266 = sand.u32 %s139, 1
        %s1267 = scalar_lea.vmem [#allocation8], %s1266
        // Predicated region
        $region83: #{tpu_custom_call.1} parent=73 // pred_check
          %p1268 = pneg %p149
        $region84: #{tpu_custom_call.1} parent=73 // pred_check_branch
          %1270 = sbr.rel (%p1268) target = $region86
        $region85: #{tpu_custom_call.1} parent=73 // pred_region
          %s1272 = ssub.s32 16, 16
          %1273 = vsyncadd %s1265, %s1272
          %s1274 = smul.addr %s21, 16
          %s1275 = scalar_lea.hbm %s5, %s1274
          %s1277 = sshll.u32 %s1267, 4
          %s1278 = int_to_ptr.vmem [resolvable:$true] %s1277
          %1280 = dma.vmem_to_hbm [thread:$0]  %s1278, 16, %s1275, %s1265
        $region86: #{tpu_custom_call.1} parent=73 // pred_fallthru
          _
      $region74: #{tpu_custom_call.1} parent=5 // pred_fallthru
        _
      %p1281 = scmp.le.s32.totalorder 2, %s16
      // Predicated region
      $region87: #{tpu_custom_call.1} parent=5 // pred_check
        %p1282 = pneg %p1281
      $region88: #{tpu_custom_call.1} parent=5 // pred_check_branch
        %1284 = sbr.rel (%p1282) target = $region90
      $region89: #{tpu_custom_call.1} parent=5 // pred_region
        %s1285 = ssub.s32 %s16, 2
        // Predicated region
        $region91: #{tpu_custom_call.1} parent=89 // pred_check
          %p1286 = pneg %p155
        $region92: #{tpu_custom_call.1} parent=89 // pred_check_branch
          %1288 = sbr.rel (%p1286) target = $region94
        $region93: #{tpu_custom_call.1} parent=89 // pred_region
          %s1289 = sand.u32 %s140, 1
          %s1290 = scalar_lea.sflag [#allocation7], %s1289
          %s1291 = sand.u32 %s140, 1
          %s1292 = scalar_lea.vmem [#allocation8], %s1291
          %1293 = dma.done %s1290, 16
        $region94: #{tpu_custom_call.1} parent=89 // pred_fallthru
          _
      $region90: #{tpu_custom_call.1} parent=5 // pred_fallthru
        _
    $region6: #{tpu_custom_call.1} parent=1 // loop_footer
      %s20 = sadd.s32 1, %s16
    $region7: #{tpu_custom_call.1} parent=1 // loop_footer_branch
      %15 = sbr.rel target = $region3
    $region8: #{tpu_custom_call.1} parent=1 // loop_exit
      _
    %1294 = vsyncpa [#allocation6], 1
    %s1295 = scalar_lea.sflag [#allocation6], 1
    %1296 = vsyncpa %s1295, 1
    %1297 = vsyncpa [#allocation7], 1
    %s1298 = scalar_lea.sflag [#allocation7], 1
    %1299 = vsyncpa %s1298, 1

</llo_original>
